<compile_context>
chip_gen: v6e
topology: v6e:2x2x1
jax: 0.10.0
libtpu: 0.0.40
codegen_flags: <defaults>
</compile_context>

<pallas_src>
import jax
import jax.numpy as jnp
from jax.experimental import pallas as pl
from jax.experimental.pallas import tpu as pltpu

_EPS = 1e-5  # PyTorch BatchNorm1d default eps


# --------------------------- Fused forward kernel --------------------------- #
def _hash_forward_kernel(x_ref,
                         w1a_ref, w1b_ref, b1_ref,
                         w2a_ref, w2b_ref, b2_ref,
                         w3a_ref, w3b_ref, b3_ref,
                         wl1_ref, bl1_ref, g1_ref, be1_ref,
                         wl2_ref, bl2_ref, g2_ref, be2_ref,
                         wl3_ref, bl3_ref,
                         o_ref):
    h = x_ref[...]                      # (B*8, 64), NLC flattened to 2-D
    rows = h.shape[0]                   # B*8 (static)

    def conv_relu(h, wa_ref, wb_ref, b_ref):
        # Conv1d(kernel_size=2, stride=1) + ReLU on the padded (B*8, C) buffer:
        #   out[r] = h[r] @ W_tap0 + h[r+1] @ W_tap1 + b      (cyclic at the end)
        # pltpu.roll(shift=rows-1) brings row r+1 to row r (== jnp.roll shift=-1);
        # the XLU rotate replaces per-layer concat/slice relayouts. Rows past the
        # valid length per batch element are garbage but never feed valid rows.
        y = jnp.dot(h, wa_ref[...], preferred_element_type=jnp.float32)
        y = y + jnp.dot(pltpu.roll(h, shift=rows - 1, axis=0), wb_ref[...],
                        preferred_element_type=jnp.float32)
        return jnp.maximum(y + b_ref[...], 0.0)

    h = conv_relu(h, w1a_ref, w1b_ref, b1_ref)   # (B*8, 512), t=0..6 valid
    h = conv_relu(h, w2a_ref, w2b_ref, b2_ref)   # (B*8, 256), t=0..5 valid
    h = conv_relu(h, w3a_ref, w3b_ref, b3_ref)   # (B*8, 128), t=0..4 valid

    # Zero-mask the invalid rows exactly once (post-ReLU values are >= 0, so
    # zeros never change the max), then MaxPool1d(5) + flatten -> (B, 128).
    t = jax.lax.broadcasted_iota(jnp.int32, h.shape, 0) % 8
    h = jnp.where(t < 5, h, 0.0)
    f = jnp.max(h.reshape(rows // 8, 8, 128), axis=1)        # (B, 128)

    def linear(z, w_ref, b_ref):
        return jnp.dot(z, w_ref[...], preferred_element_type=jnp.float32) + b_ref[...]

    def bn_relu(z, g_ref, be_ref):
        # BatchNorm1d, training mode: batch statistics, biased variance.
        # Single pass: d = z - mean reused for variance and normalization.
        mean = jnp.mean(z, axis=0, keepdims=True)
        d = z - mean
        var = jnp.mean(d * d, axis=0, keepdims=True)
        zn = d * jax.lax.rsqrt(var + _EPS)
        return jnp.maximum(zn * g_ref[...] + be_ref[...], 0.0)

    z = bn_relu(linear(f, wl1_ref, bl1_ref), g1_ref, be1_ref)   # (B, 512)
    z = bn_relu(linear(z, wl2_ref, bl2_ref), g2_ref, be2_ref)   # (B, 256)
    z = linear(z, wl3_ref, bl3_ref)                             # (B, 128)
    o_ref[...] = jax.nn.sigmoid(z)


# ------------------------------- Wrapper ------------------------------------ #
def hash_function_forward(x_ncl, params):
    """x_ncl: (B, 64, 8) float32 (PyTorch NCL). Returns (B, 128)."""
    B, C_in, L = x_ncl.shape
    assert C_in == 64 and L == 8, "model spec fixes (C, L) = (64, 8)"
    # Whole-batch fused kernel: ~2.5 MB weights + ~35 KB live activations per batch
    # row; B <= 128 keeps the peak well under the 32 MiB scoped-VMEM limit below
    # (valid for v5e/v6e/v7x).
    assert B <= 128, "whole-batch fused kernel sized for small/moderate B"

    # NCL -> NLC, flattened to a tile-aligned 2-D (B*8, 64) buffer (done in XLA).
    x2d = jnp.transpose(x_ncl, (0, 2, 1)).reshape(B * L, C_in)

    vmem = pl.BlockSpec(memory_space=pltpu.MemorySpace.VMEM)
    args = (x2d,) + tuple(params)

    out = pl.pallas_call(
        _hash_forward_kernel,
        out_shape=jax.ShapeDtypeStruct((B, 128), jnp.float32),
        in_specs=[vmem] * len(args),
        out_specs=vmem,
        compiler_params=pltpu.CompilerParams(vmem_limit_bytes=32 * 1024 * 1024),
    )(*args)
    return out


# ------------------------- Deterministic parameter init --------------------- #
def init_params(key):
    def dense(k, fan_in, fan_out):
        return jax.random.normal(k, (fan_in, fan_out), jnp.float32) / jnp.sqrt(
            jnp.float32(fan_in))

    def bias(k, n):
        return 0.01 * jax.random.normal(k, (1, n), jnp.float32)

    ks = jax.random.split(key, 20)
    # Conv weights stored per kernel tap as (C_in, C_out); no per-call concat needed.
    w1a, w1b, b1 = dense(ks[0], 64, 512), dense(ks[1], 64, 512), bias(ks[2], 512)
    w2a, w2b, b2 = dense(ks[3], 512, 256), dense(ks[4], 512, 256), bias(ks[5], 256)
    w3a, w3b, b3 = dense(ks[6], 256, 128), dense(ks[7], 256, 128), bias(ks[8], 128)
    # Linear weights (in, out) + BatchNorm affine params.
    wl1, bl1 = dense(ks[9], 128, 512), bias(ks[10], 512)
    g1 = 1.0 + 0.1 * jax.random.normal(ks[11], (1, 512), jnp.float32)
    be1 = 0.1 * jax.random.normal(ks[12], (1, 512), jnp.float32)
    wl2, bl2 = dense(ks[13], 512, 256), bias(ks[14], 256)
    g2 = 1.0 + 0.1 * jax.random.normal(ks[15], (1, 256), jnp.float32)
    be2 = 0.1 * jax.random.normal(ks[16], (1, 256), jnp.float32)
    wl3, bl3 = dense(ks[17], 256, 128), bias(ks[18], 128)
    return (w1a, w1b, b1, w2a, w2b, b2, w3a, w3b, b3,
            wl1, bl1, g1, be1, wl2, bl2, g2, be2, wl3, bl3)


# ----------------------------- Pure-JAX reference --------------------------- #
def reference_forward(x_ncl, params):
    (w1a, w1b, b1, w2a, w2b, b2, w3a, w3b, b3,
     wl1, bl1, g1, be1, wl2, bl2, g2, be2, wl3, bl3) = params
    x = jnp.transpose(x_ncl, (0, 2, 1))  # (B, L, 64)

    def conv_relu(h, wa, wb, b):
        ya = jnp.einsum('btc,co->bto', h, wa)
        yb = jnp.einsum('btc,co->bto', h, wb)
        return jnp.maximum(ya[:, :-1] + yb[:, 1:] + b[None], 0.0)

    h = conv_relu(x, w1a, w1b, b1)
    h = conv_relu(h, w2a, w2b, b2)
    h = conv_relu(h, w3a, w3b, b3)
    f = jnp.max(h, axis=1)  # MaxPool1d(5) + flatten -> (B, 128)

    def bn_relu(z, g, be):
        m = jnp.mean(z, axis=0, keepdims=True)
        v = jnp.mean((z - m) ** 2, axis=0, keepdims=True)
        return jnp.maximum((z - m) / jnp.sqrt(v + _EPS) * g + be, 0.0)

    z = bn_relu(f @ wl1 + bl1, g1, be1)
    z = bn_relu(z @ wl2 + bl2, g2, be2)
    z = z @ wl3 + bl3
    return jax.nn.sigmoid(z)


if __name__ == "__main__":
    key = jax.random.PRNGKey(0)
    kx, kp = jax.random.split(key)

    # Input: (batch=2, channels=64, length=8).
    # Length 8 -> 7 -> 6 -> 5 after the three k=2 convs -> MaxPool1d(5) -> 1,
    # so the flatten yields exactly 128 features for Linear(128, 512).
    B, C, L = 2, 64, 8
    x = jax.random.normal(kx, (B, C, L), jnp.float32)
    params = init_params(kp)

    out = hash_function_forward(x, params)
    out = jax.block_until_ready(out)

    ref = reference_forward(x, params)
    assert out.shape == (B, 128), out.shape
    assert bool(jnp.all(jnp.isfinite(out)))
    assert bool(jnp.allclose(out, ref, atol=1e-3, rtol=1e-3))
    print("KERNEL_OK")
</pallas_src>

<mosaic_0001>
module attributes {stable_mosaic.version = 11 : i64} {
  func.func @_hash_forward_kernel(%arg0: memref<16x64xf32, #tpu.memory_space<vmem>>, %arg1: memref<64x512xf32, #tpu.memory_space<vmem>>, %arg2: memref<64x512xf32, #tpu.memory_space<vmem>>, %arg3: memref<1x512xf32, #tpu.memory_space<vmem>>, %arg4: memref<512x256xf32, #tpu.memory_space<vmem>>, %arg5: memref<512x256xf32, #tpu.memory_space<vmem>>, %arg6: memref<1x256xf32, #tpu.memory_space<vmem>>, %arg7: memref<256x128xf32, #tpu.memory_space<vmem>>, %arg8: memref<256x128xf32, #tpu.memory_space<vmem>>, %arg9: memref<1x128xf32, #tpu.memory_space<vmem>>, %arg10: memref<128x512xf32, #tpu.memory_space<vmem>>, %arg11: memref<1x512xf32, #tpu.memory_space<vmem>>, %arg12: memref<1x512xf32, #tpu.memory_space<vmem>>, %arg13: memref<1x512xf32, #tpu.memory_space<vmem>>, %arg14: memref<512x256xf32, #tpu.memory_space<vmem>>, %arg15: memref<1x256xf32, #tpu.memory_space<vmem>>, %arg16: memref<1x256xf32, #tpu.memory_space<vmem>>, %arg17: memref<1x256xf32, #tpu.memory_space<vmem>>, %arg18: memref<256x128xf32, #tpu.memory_space<vmem>>, %arg19: memref<1x128xf32, #tpu.memory_space<vmem>>, %arg20: memref<2x128xf32, #tpu.memory_space<vmem>>) attributes {dimension_semantics = [], scalar_prefetch = 0 : i64, scratch_operands = 0 : i64, tpu.core_type = #tpu.core_type<tc>} {
    %c0 = arith.constant 0 : index
    %c0_0 = arith.constant 0 : index
    %0 = vector.load %arg0[%c0, %c0_0] : memref<16x64xf32, #tpu.memory_space<vmem>>, vector<16x64xf32>
    %c0_1 = arith.constant 0 : index
    %c0_2 = arith.constant 0 : index
    %1 = vector.load %arg1[%c0_1, %c0_2] : memref<64x512xf32, #tpu.memory_space<vmem>>, vector<64x512xf32>
    %cst = arith.constant dense<0.000000e+00> : vector<16x512xf32>
    %2 = tpu.matmul %0, %1, %cst {dimension_numbers = #tpu.dot_dimension_numbers<[1], [0], [0], [1], [0, 0, 1, 1], [], []>} : vector<16x64xf32>, vector<64x512xf32>, vector<16x512xf32> -> vector<16x512xf32>
    %c15_i32 = arith.constant 15 : i32
    %3 = tpu.dynamic_rotate %0 by %c15_i32 dim 0 : vector<16x64xf32>, i32 -> vector<16x64xf32>
    %c0_3 = arith.constant 0 : index
    %c0_4 = arith.constant 0 : index
    %4 = vector.load %arg2[%c0_3, %c0_4] : memref<64x512xf32, #tpu.memory_space<vmem>>, vector<64x512xf32>
    %cst_5 = arith.constant dense<0.000000e+00> : vector<16x512xf32>
    %5 = tpu.matmul %3, %4, %cst_5 {dimension_numbers = #tpu.dot_dimension_numbers<[1], [0], [0], [1], [0, 0, 1, 1], [], []>} : vector<16x64xf32>, vector<64x512xf32>, vector<16x512xf32> -> vector<16x512xf32>
    %6 = arith.addf %2, %5 : vector<16x512xf32>
    %c0_6 = arith.constant 0 : index
    %c0_7 = arith.constant 0 : index
    %7 = vector.load %arg3[%c0_6, %c0_7] : memref<1x512xf32, #tpu.memory_space<vmem>>, vector<1x512xf32>
    %8 = vector.broadcast %7 : vector<1x512xf32> to vector<16x512xf32>
    %9 = arith.addf %6, %8 : vector<16x512xf32>
    %cst_8 = arith.constant 0.000000e+00 : f32
    %10 = vector.broadcast %cst_8 : f32 to vector<16x512xf32>
    %11 = arith.maximumf %9, %10 : vector<16x512xf32>
    %c0_9 = arith.constant 0 : index
    %c0_10 = arith.constant 0 : index
    %12 = vector.load %arg4[%c0_9, %c0_10] : memref<512x256xf32, #tpu.memory_space<vmem>>, vector<512x256xf32>
    %cst_11 = arith.constant dense<0.000000e+00> : vector<16x256xf32>
    %13 = tpu.matmul %11, %12, %cst_11 {dimension_numbers = #tpu.dot_dimension_numbers<[1], [0], [0], [1], [0, 0, 1, 1], [], []>} : vector<16x512xf32>, vector<512x256xf32>, vector<16x256xf32> -> vector<16x256xf32>
    %c15_i32_12 = arith.constant 15 : i32
    %14 = tpu.dynamic_rotate %11 by %c15_i32_12 dim 0 : vector<16x512xf32>, i32 -> vector<16x512xf32>
    %c0_13 = arith.constant 0 : index
    %c0_14 = arith.constant 0 : index
    %15 = vector.load %arg5[%c0_13, %c0_14] : memref<512x256xf32, #tpu.memory_space<vmem>>, vector<512x256xf32>
    %cst_15 = arith.constant dense<0.000000e+00> : vector<16x256xf32>
    %16 = tpu.matmul %14, %15, %cst_15 {dimension_numbers = #tpu.dot_dimension_numbers<[1], [0], [0], [1], [0, 0, 1, 1], [], []>} : vector<16x512xf32>, vector<512x256xf32>, vector<16x256xf32> -> vector<16x256xf32>
    %17 = arith.addf %13, %16 : vector<16x256xf32>
    %c0_16 = arith.constant 0 : index
    %c0_17 = arith.constant 0 : index
    %18 = vector.load %arg6[%c0_16, %c0_17] : memref<1x256xf32, #tpu.memory_space<vmem>>, vector<1x256xf32>
    %19 = vector.broadcast %18 : vector<1x256xf32> to vector<16x256xf32>
    %20 = arith.addf %17, %19 : vector<16x256xf32>
    %cst_18 = arith.constant 0.000000e+00 : f32
    %21 = vector.broadcast %cst_18 : f32 to vector<16x256xf32>
    %22 = arith.maximumf %20, %21 : vector<16x256xf32>
    %c0_19 = arith.constant 0 : index
    %c0_20 = arith.constant 0 : index
    %23 = vector.load %arg7[%c0_19, %c0_20] : memref<256x128xf32, #tpu.memory_space<vmem>>, vector<256x128xf32>
    %cst_21 = arith.constant dense<0.000000e+00> : vector<16x128xf32>
    %24 = tpu.matmul %22, %23, %cst_21 {dimension_numbers = #tpu.dot_dimension_numbers<[1], [0], [0], [1], [0, 0, 1, 1], [], []>} : vector<16x256xf32>, vector<256x128xf32>, vector<16x128xf32> -> vector<16x128xf32>
    %c15_i32_22 = arith.constant 15 : i32
    %25 = tpu.dynamic_rotate %22 by %c15_i32_22 dim 0 : vector<16x256xf32>, i32 -> vector<16x256xf32>
    %c0_23 = arith.constant 0 : index
    %c0_24 = arith.constant 0 : index
    %26 = vector.load %arg8[%c0_23, %c0_24] : memref<256x128xf32, #tpu.memory_space<vmem>>, vector<256x128xf32>
    %cst_25 = arith.constant dense<0.000000e+00> : vector<16x128xf32>
    %27 = tpu.matmul %25, %26, %cst_25 {dimension_numbers = #tpu.dot_dimension_numbers<[1], [0], [0], [1], [0, 0, 1, 1], [], []>} : vector<16x256xf32>, vector<256x128xf32>, vector<16x128xf32> -> vector<16x128xf32>
    %28 = arith.addf %24, %27 : vector<16x128xf32>
    %c0_26 = arith.constant 0 : index
    %c0_27 = arith.constant 0 : index
    %29 = vector.load %arg9[%c0_26, %c0_27] : memref<1x128xf32, #tpu.memory_space<vmem>>, vector<1x128xf32>
    %30 = vector.broadcast %29 : vector<1x128xf32> to vector<16x128xf32>
    %31 = arith.addf %28, %30 : vector<16x128xf32>
    %cst_28 = arith.constant 0.000000e+00 : f32
    %32 = vector.broadcast %cst_28 : f32 to vector<16x128xf32>
    %33 = arith.maximumf %31, %32 : vector<16x128xf32>
    %34 = tpu.iota {dimensions = array<i32: 0>} : vector<16x128xi32>
    %c8_i32 = arith.constant 8 : i32
    %c0_i32 = arith.constant 0 : i32
    %35 = arith.cmpi eq, %c8_i32, %c0_i32 : i32
    %c1_i32 = arith.constant 1 : i32
    %36 = arith.select %35, %c1_i32, %c8_i32 : i32
    %37 = vector.broadcast %36 : i32 to vector<16x128xi32>
    %38 = arith.remsi %34, %37 : vector<16x128xi32>
    %c0_i32_29 = arith.constant 0 : i32
    %39 = vector.broadcast %c0_i32_29 : i32 to vector<16x128xi32>
    %40 = arith.cmpi ne, %38, %39 : vector<16x128xi32>
    %c0_i32_30 = arith.constant 0 : i32
    %41 = vector.broadcast %c0_i32_30 : i32 to vector<16x128xi32>
    %42 = arith.cmpi slt, %38, %41 : vector<16x128xi32>
    %c0_i32_31 = arith.constant 0 : i32
    %43 = arith.cmpi slt, %36, %c0_i32_31 : i32
    %44 = vector.broadcast %43 : i1 to vector<16x128xi1>
    %45 = vector.broadcast %44 : vector<16x128xi1> to vector<16x128xi1>
    %46 = arith.xori %42, %45 : vector<16x128xi1>
    %47 = arith.andi %46, %40 : vector<16x128xi1>
    %48 = vector.broadcast %36 : i32 to vector<16x128xi32>
    %49 = arith.addi %38, %48 : vector<16x128xi32>
    %50 = arith.select %47, %49, %38 : vector<16x128xi1>, vector<16x128xi32>
    %c5_i32 = arith.constant 5 : i32
    %51 = vector.broadcast %c5_i32 : i32 to vector<16x128xi32>
    %52 = arith.cmpi slt, %50, %51 : vector<16x128xi32>
    %cst_32 = arith.constant 0.000000e+00 : f32
    %53 = vector.broadcast %cst_32 : f32 to vector<16x128xf32>
    %54 = arith.select %52, %33, %53 : vector<16x128xi1>, vector<16x128xf32>
    %55 = vector.shape_cast %54 : vector<16x128xf32> to vector<2x8x128xf32>
    %cst_33 = arith.constant dense<0xFF800000> : vector<2x128xf32>
    %56 = vector.multi_reduction <maximumf>, %55, %cst_33 [1] : vector<2x8x128xf32> to vector<2x128xf32>
    %c0_34 = arith.constant 0 : index
    %c0_35 = arith.constant 0 : index
    %57 = vector.load %arg10[%c0_34, %c0_35] : memref<128x512xf32, #tpu.memory_space<vmem>>, vector<128x512xf32>
    %cst_36 = arith.constant dense<0.000000e+00> : vector<2x512xf32>
    %58 = tpu.matmul %56, %57, %cst_36 {dimension_numbers = #tpu.dot_dimension_numbers<[1], [0], [0], [1], [0, 0, 1, 1], [], []>} : vector<2x128xf32>, vector<128x512xf32>, vector<2x512xf32> -> vector<2x512xf32>
    %c0_37 = arith.constant 0 : index
    %c0_38 = arith.constant 0 : index
    %59 = vector.load %arg11[%c0_37, %c0_38] : memref<1x512xf32, #tpu.memory_space<vmem>>, vector<1x512xf32>
    %60 = vector.broadcast %59 : vector<1x512xf32> to vector<2x512xf32>
    %61 = arith.addf %58, %60 : vector<2x512xf32>
    %cst_39 = arith.constant dense<0.000000e+00> : vector<512xf32>
    %62 = vector.multi_reduction <add>, %61, %cst_39 [0] : vector<2x512xf32> to vector<512xf32>
    %63 = vector.shape_cast %62 : vector<512xf32> to vector<1x512xf32>
    %cst_40 = arith.constant 2.000000e+00 : f32
    %64 = vector.broadcast %cst_40 : f32 to vector<1x512xf32>
    %65 = arith.divf %63, %64 : vector<1x512xf32>
    %66 = vector.broadcast %65 : vector<1x512xf32> to vector<2x512xf32>
    %67 = arith.subf %61, %66 : vector<2x512xf32>
    %68 = arith.mulf %67, %67 : vector<2x512xf32>
    %cst_41 = arith.constant dense<0.000000e+00> : vector<512xf32>
    %69 = vector.multi_reduction <add>, %68, %cst_41 [0] : vector<2x512xf32> to vector<512xf32>
    %70 = vector.shape_cast %69 : vector<512xf32> to vector<1x512xf32>
    %cst_42 = arith.constant 2.000000e+00 : f32
    %71 = vector.broadcast %cst_42 : f32 to vector<1x512xf32>
    %72 = arith.divf %70, %71 : vector<1x512xf32>
    %cst_43 = arith.constant 9.99999974E-6 : f32
    %73 = vector.broadcast %cst_43 : f32 to vector<1x512xf32>
    %74 = arith.addf %72, %73 : vector<1x512xf32>
    %75 = math.rsqrt %74 : vector<1x512xf32>
    %76 = vector.broadcast %75 : vector<1x512xf32> to vector<2x512xf32>
    %77 = arith.mulf %67, %76 : vector<2x512xf32>
    %c0_44 = arith.constant 0 : index
    %c0_45 = arith.constant 0 : index
    %78 = vector.load %arg12[%c0_44, %c0_45] : memref<1x512xf32, #tpu.memory_space<vmem>>, vector<1x512xf32>
    %79 = vector.broadcast %78 : vector<1x512xf32> to vector<2x512xf32>
    %80 = arith.mulf %77, %79 : vector<2x512xf32>
    %c0_46 = arith.constant 0 : index
    %c0_47 = arith.constant 0 : index
    %81 = vector.load %arg13[%c0_46, %c0_47] : memref<1x512xf32, #tpu.memory_space<vmem>>, vector<1x512xf32>
    %82 = vector.broadcast %81 : vector<1x512xf32> to vector<2x512xf32>
    %83 = arith.addf %80, %82 : vector<2x512xf32>
    %cst_48 = arith.constant 0.000000e+00 : f32
    %84 = vector.broadcast %cst_48 : f32 to vector<2x512xf32>
    %85 = arith.maximumf %83, %84 : vector<2x512xf32>
    %c0_49 = arith.constant 0 : index
    %c0_50 = arith.constant 0 : index
    %86 = vector.load %arg14[%c0_49, %c0_50] : memref<512x256xf32, #tpu.memory_space<vmem>>, vector<512x256xf32>
    %cst_51 = arith.constant dense<0.000000e+00> : vector<2x256xf32>
    %87 = tpu.matmul %85, %86, %cst_51 {dimension_numbers = #tpu.dot_dimension_numbers<[1], [0], [0], [1], [0, 0, 1, 1], [], []>} : vector<2x512xf32>, vector<512x256xf32>, vector<2x256xf32> -> vector<2x256xf32>
    %c0_52 = arith.constant 0 : index
    %c0_53 = arith.constant 0 : index
    %88 = vector.load %arg15[%c0_52, %c0_53] : memref<1x256xf32, #tpu.memory_space<vmem>>, vector<1x256xf32>
    %89 = vector.broadcast %88 : vector<1x256xf32> to vector<2x256xf32>
    %90 = arith.addf %87, %89 : vector<2x256xf32>
    %cst_54 = arith.constant dense<0.000000e+00> : vector<256xf32>
    %91 = vector.multi_reduction <add>, %90, %cst_54 [0] : vector<2x256xf32> to vector<256xf32>
    %92 = vector.shape_cast %91 : vector<256xf32> to vector<1x256xf32>
    %cst_55 = arith.constant 2.000000e+00 : f32
    %93 = vector.broadcast %cst_55 : f32 to vector<1x256xf32>
    %94 = arith.divf %92, %93 : vector<1x256xf32>
    %95 = vector.broadcast %94 : vector<1x256xf32> to vector<2x256xf32>
    %96 = arith.subf %90, %95 : vector<2x256xf32>
    %97 = arith.mulf %96, %96 : vector<2x256xf32>
    %cst_56 = arith.constant dense<0.000000e+00> : vector<256xf32>
    %98 = vector.multi_reduction <add>, %97, %cst_56 [0] : vector<2x256xf32> to vector<256xf32>
    %99 = vector.shape_cast %98 : vector<256xf32> to vector<1x256xf32>
    %cst_57 = arith.constant 2.000000e+00 : f32
    %100 = vector.broadcast %cst_57 : f32 to vector<1x256xf32>
    %101 = arith.divf %99, %100 : vector<1x256xf32>
    %cst_58 = arith.constant 9.99999974E-6 : f32
    %102 = vector.broadcast %cst_58 : f32 to vector<1x256xf32>
    %103 = arith.addf %101, %102 : vector<1x256xf32>
    %104 = math.rsqrt %103 : vector<1x256xf32>
    %105 = vector.broadcast %104 : vector<1x256xf32> to vector<2x256xf32>
    %106 = arith.mulf %96, %105 : vector<2x256xf32>
    %c0_59 = arith.constant 0 : index
    %c0_60 = arith.constant 0 : index
    %107 = vector.load %arg16[%c0_59, %c0_60] : memref<1x256xf32, #tpu.memory_space<vmem>>, vector<1x256xf32>
    %108 = vector.broadcast %107 : vector<1x256xf32> to vector<2x256xf32>
    %109 = arith.mulf %106, %108 : vector<2x256xf32>
    %c0_61 = arith.constant 0 : index
    %c0_62 = arith.constant 0 : index
    %110 = vector.load %arg17[%c0_61, %c0_62] : memref<1x256xf32, #tpu.memory_space<vmem>>, vector<1x256xf32>
    %111 = vector.broadcast %110 : vector<1x256xf32> to vector<2x256xf32>
    %112 = arith.addf %109, %111 : vector<2x256xf32>
    %cst_63 = arith.constant 0.000000e+00 : f32
    %113 = vector.broadcast %cst_63 : f32 to vector<2x256xf32>
    %114 = arith.maximumf %112, %113 : vector<2x256xf32>
    %c0_64 = arith.constant 0 : index
    %c0_65 = arith.constant 0 : index
    %115 = vector.load %arg18[%c0_64, %c0_65] : memref<256x128xf32, #tpu.memory_space<vmem>>, vector<256x128xf32>
    %cst_66 = arith.constant dense<0.000000e+00> : vector<2x128xf32>
    %116 = tpu.matmul %114, %115, %cst_66 {dimension_numbers = #tpu.dot_dimension_numbers<[1], [0], [0], [1], [0, 0, 1, 1], [], []>} : vector<2x256xf32>, vector<256x128xf32>, vector<2x128xf32> -> vector<2x128xf32>
    %c0_67 = arith.constant 0 : index
    %c0_68 = arith.constant 0 : index
    %117 = vector.load %arg19[%c0_67, %c0_68] : memref<1x128xf32, #tpu.memory_space<vmem>>, vector<1x128xf32>
    %118 = vector.broadcast %117 : vector<1x128xf32> to vector<2x128xf32>
    %119 = arith.addf %116, %118 : vector<2x128xf32>
    %120 = arith.negf %119 : vector<2x128xf32>
    %121 = math.exp %120 : vector<2x128xf32>
    %cst_69 = arith.constant 1.000000e+00 : f32
    %122 = vector.broadcast %cst_69 : f32 to vector<2x128xf32>
    %123 = arith.addf %122, %121 : vector<2x128xf32>
    %124 = arith.divf %122, %123 : vector<2x128xf32>
    %c0_70 = arith.constant 0 : index
    %c0_71 = arith.constant 0 : index
    %125 = vector.load %arg20[%c0_70, %c0_71] : memref<2x128xf32, #tpu.memory_space<vmem>>, vector<2x128xf32>
    tpu.vector_store %arg20[%c0_70, %c0_71], %124 {strides = array<i32>} : memref<2x128xf32, #tpu.memory_space<vmem>>, vector<2x128xf32>,
    return
  }
}

</mosaic_0001>

<llo_original>
// kernel: tpu_custom_call.1
$region0: #{tpu_custom_call.1}
  #allocation0 [shape = 'u32[]', space=smem, size = 0x4, offset = 0x4, fixed_abs, tag = 'smem constant byte address 0x4 - core index']
  #allocation1 [shape = 'u32[144,128]{1,0:T(1,128)}', space=vmem, size = 0x12000, scoped, tag = 'internal scratch']
  %s0 = inlined_call_operand.hbm [shape: f32[16,64], index: 0, kind: input, shape index: {}]
  %s1 = inlined_call_operand.hbm [shape: f32[64,512], index: 1, kind: input, shape index: {}]
  %s2 = inlined_call_operand.hbm [shape: f32[64,512], index: 2, kind: input, shape index: {}]
  %s3 = inlined_call_operand.vmem [shape: f32[1,512], index: 3, kind: input, shape index: {}]
  %s4 = inlined_call_operand.hbm [shape: f32[512,256], index: 4, kind: input, shape index: {}]
  %s5 = inlined_call_operand.hbm [shape: f32[512,256], index: 5, kind: input, shape index: {}]
  %s6 = inlined_call_operand.hbm [shape: f32[1,256], index: 6, kind: input, shape index: {}]
  %s7 = inlined_call_operand.hbm [shape: f32[256,128], index: 7, kind: input, shape index: {}]
  %s8 = inlined_call_operand.hbm [shape: f32[256,128], index: 8, kind: input, shape index: {}]
  %s9 = inlined_call_operand.hbm [shape: f32[1,128], index: 9, kind: input, shape index: {}]
  %s10 = inlined_call_operand.hbm [shape: f32[128,512], index: 10, kind: input, shape index: {}]
  %s11 = inlined_call_operand.vmem [shape: f32[1,512], index: 11, kind: input, shape index: {}]
  %s12 = inlined_call_operand.vmem [shape: f32[1,512], index: 12, kind: input, shape index: {}]
  %s13 = inlined_call_operand.vmem [shape: f32[1,512], index: 13, kind: input, shape index: {}]
  %s14 = inlined_call_operand.hbm [shape: f32[512,256], index: 14, kind: input, shape index: {}]
  %s15 = inlined_call_operand.vmem [shape: f32[1,256], index: 15, kind: input, shape index: {}]
  %s16 = inlined_call_operand.vmem [shape: f32[1,256], index: 16, kind: input, shape index: {}]
  %s17 = inlined_call_operand.vmem [shape: f32[1,256], index: 17, kind: input, shape index: {}]
  %s18 = inlined_call_operand.hbm [shape: f32[256,128], index: 18, kind: input, shape index: {}]
  %s19 = inlined_call_operand.vmem [shape: f32[1,128], index: 19, kind: input, shape index: {}]
  %s20 = inlined_call_operand.hbm [shape: f32[2,128], index: 20, kind: output, shape index: {}]
  %s21 = sld [smem:[#allocation0]]
  $region138: #{tpu_custom_call.1} parent=0
    _
  %s23 = ssub.s32 1, %s21
  %s24 = scalar_select 0, %s23, %s21
  $region1: #{tpu_custom_call.1} parent=0
    #allocation2 [shape = 'u8[8192]{0}', space=vmem, size = 0x2000, scoped, tag = 'input window, operand 0, single buffered']
    #allocation3 [shape = 's32[1]{0}', space=sflag, size = 0x4, scoped, tag = 'scoped memory for tpu_custom_call.1']
    #allocation4 [shape = 's32[1]{0}', space=sflag, size = 0x4, scoped, tag = 'scoped memory for tpu_custom_call.1']
    #allocation5 [shape = 'u8[131072]{0}', space=vmem, size = 0x20000, scoped, tag = 'input window, operand 1, single buffered']
    #allocation6 [shape = 's32[1]{0}', space=sflag, size = 0x4, scoped, tag = 'scoped memory for tpu_custom_call.1']
    #allocation7 [shape = 'u8[131072]{0}', space=vmem, size = 0x20000, scoped, tag = 'input window, operand 2, single buffered']
    #allocation8 [shape = 'u8[524288]{0}', space=vmem, size = 0x80000, scoped, tag = 'input window, operand 4, single buffered']
    #allocation9 [shape = 's32[1]{0}', space=sflag, size = 0x4, scoped, tag = 'scoped memory for tpu_custom_call.1']
    #allocation10 [shape = 'u8[524288]{0}', space=vmem, size = 0x80000, scoped, tag = 'input window, operand 5, single buffered']
    #allocation11 [shape = 'u8[1024]{0}', space=vmem, size = 0x400, scoped, tag = 'input window, operand 6, single buffered']
    #allocation12 [shape = 's32[1]{0}', space=sflag, size = 0x4, scoped, tag = 'scoped memory for tpu_custom_call.1']
    #allocation13 [shape = 'u8[131072]{0}', space=vmem, size = 0x20000, scoped, tag = 'input window, operand 7, single buffered']
    #allocation14 [shape = 'u8[131072]{0}', space=vmem, size = 0x20000, scoped, tag = 'input window, operand 8, single buffered']
    #allocation15 [shape = 's32[1]{0}', space=sflag, size = 0x4, scoped, tag = 'scoped memory for tpu_custom_call.1']
    #allocation16 [shape = 'u8[512]{0}', space=vmem, size = 0x400, scoped, tag = 'input window, operand 9, single buffered']
    #allocation17 [shape = 'u8[262144]{0}', space=vmem, size = 0x40000, scoped, tag = 'input window, operand 10, single buffered']
    #allocation18 [shape = 's32[1]{0}', space=sflag, size = 0x4, scoped, tag = 'scoped memory for tpu_custom_call.1']
    #allocation19 [shape = 'u8[524288]{0}', space=vmem, size = 0x80000, scoped, tag = 'input window, operand 14, single buffered']
    #allocation20 [shape = 'u8[131072]{0}', space=vmem, size = 0x20000, scoped, tag = 'input window, operand 18, single buffered']
    #allocation21 [shape = 's32[1]{0}', space=sflag, size = 0x4, scoped, tag = 'scoped memory for tpu_custom_call.1']
    #allocation22 [shape = 'u8[1024]{0}', space=vmem, size = 0x400, scoped, tag = 'output window, operand 0, single buffered']
    %25 = vsyncpa [#allocation3], 0
    %26 = vsyncpa [#allocation6], 0
    %27 = vsyncpa [#allocation9], 0
    %28 = vsyncpa [#allocation12], 0
    %29 = vsyncpa [#allocation15], 0
    %30 = vsyncpa [#allocation18], 0
    %31 = vsyncpa [#allocation21], 0
    %32 = vsyncpa [#allocation4], 0
    // Predicated region
    $region2: #{tpu_custom_call.1} parent=1 // pred_check
      _
    $region3: #{tpu_custom_call.1} parent=1 // pred_check_branch
      %34 = sbr.rel (0) target = $region5
    $region4: #{tpu_custom_call.1} parent=1 // pred_region
      %s36 = ssub.s32 256, 256
      %37 = vsyncadd [#allocation3], %s36
      %s38 = sshll.u32 [#allocation2], 4
      %s39 = int_to_ptr.vmem [resolvable:$true] %s38
      %44 = dma.hbm_to_vmem [thread:$0]  %s0, 256, %s39, [#allocation3], 128, 128, 8
    $region5: #{tpu_custom_call.1} parent=1 // pred_fallthru
      _
    // Predicated region
    $region6: #{tpu_custom_call.1} parent=1 // pred_check
      _
    $region7: #{tpu_custom_call.1} parent=1 // pred_check_branch
      %46 = sbr.rel (0) target = $region9
    $region8: #{tpu_custom_call.1} parent=1 // pred_region
      %s48 = ssub.s32 4096, 4096
      %49 = vsyncadd [#allocation6], %s48
      %s50 = sshll.u32 [#allocation5], 4
      %s51 = int_to_ptr.vmem [resolvable:$true] %s50
      %56 = dma.hbm_to_vmem [thread:$0]  %s1, 4096, %s51, [#allocation6], 512, 512, 32
    $region9: #{tpu_custom_call.1} parent=1 // pred_fallthru
      _
    // Predicated region
    $region10: #{tpu_custom_call.1} parent=1 // pred_check
      _
    $region11: #{tpu_custom_call.1} parent=1 // pred_check_branch
      %58 = sbr.rel (0) target = $region13
    $region12: #{tpu_custom_call.1} parent=1 // pred_region
      %s60 = ssub.s32 4096, 4096
      %61 = vsyncadd [#allocation6], %s60
      %s62 = sshll.u32 [#allocation7], 4
      %s63 = int_to_ptr.vmem [resolvable:$true] %s62
      %68 = dma.hbm_to_vmem [thread:$0]  %s2, 4096, %s63, [#allocation6], 512, 512, 32
    $region13: #{tpu_custom_call.1} parent=1 // pred_fallthru
      _
    // Predicated region
    $region14: #{tpu_custom_call.1} parent=1 // pred_check
      _
    $region15: #{tpu_custom_call.1} parent=1 // pred_check_branch
      %70 = sbr.rel (0) target = $region17
    $region16: #{tpu_custom_call.1} parent=1 // pred_region
      _
    $region17: #{tpu_custom_call.1} parent=1 // pred_fallthru
      _
    // Predicated region
    $region18: #{tpu_custom_call.1} parent=1 // pred_check
      _
    $region19: #{tpu_custom_call.1} parent=1 // pred_check_branch
      %72 = sbr.rel (0) target = $region21
    $region20: #{tpu_custom_call.1} parent=1 // pred_region
      %s74 = ssub.s32 16384, 16384
      %75 = vsyncadd [#allocation9], %s74
      %s76 = sshll.u32 [#allocation8], 4
      %s77 = int_to_ptr.vmem [resolvable:$true] %s76
      %82 = dma.hbm_to_vmem [thread:$0]  %s4, 16384, %s77, [#allocation9], 256, 256, 16
    $region21: #{tpu_custom_call.1} parent=1 // pred_fallthru
      _
    // Predicated region
    $region22: #{tpu_custom_call.1} parent=1 // pred_check
      _
    $region23: #{tpu_custom_call.1} parent=1 // pred_check_branch
      %84 = sbr.rel (0) target = $region25
    $region24: #{tpu_custom_call.1} parent=1 // pred_region
      %s86 = ssub.s32 16384, 16384
      %87 = vsyncadd [#allocation9], %s86
      %s88 = sshll.u32 [#allocation10], 4
      %s89 = int_to_ptr.vmem [resolvable:$true] %s88
      %94 = dma.hbm_to_vmem [thread:$0]  %s5, 16384, %s89, [#allocation9], 256, 256, 16
    $region25: #{tpu_custom_call.1} parent=1 // pred_fallthru
      _
    // Predicated region
    $region26: #{tpu_custom_call.1} parent=1 // pred_check
      _
    $region27: #{tpu_custom_call.1} parent=1 // pred_check_branch
      %96 = sbr.rel (0) target = $region29
    $region28: #{tpu_custom_call.1} parent=1 // pred_region
      %s98 = ssub.s32 32, 32
      %99 = vsyncadd [#allocation12], %s98
      %s101 = sshll.u32 [#allocation11], 4
      %s102 = int_to_ptr.vmem [resolvable:$true] %s101
      %104 = dma.hbm_to_vmem [thread:$0]  %s6, 32, %s102, [#allocation12]
    $region29: #{tpu_custom_call.1} parent=1 // pred_fallthru
      _
    // Predicated region
    $region30: #{tpu_custom_call.1} parent=1 // pred_check
      _
    $region31: #{tpu_custom_call.1} parent=1 // pred_check_branch
      %106 = sbr.rel (0) target = $region33
    $region32: #{tpu_custom_call.1} parent=1 // pred_region
      %s108 = ssub.s32 4096, 4096
      %109 = vsyncadd [#allocation12], %s108
      %s110 = sshll.u32 [#allocation13], 4
      %s111 = int_to_ptr.vmem [resolvable:$true] %s110
      %116 = dma.hbm_to_vmem [thread:$0]  %s7, 4096, %s111, [#allocation12], 128, 128, 8
    $region33: #{tpu_custom_call.1} parent=1 // pred_fallthru
      _
    // Predicated region
    $region34: #{tpu_custom_call.1} parent=1 // pred_check
      _
    $region35: #{tpu_custom_call.1} parent=1 // pred_check_branch
      %118 = sbr.rel (0) target = $region37
    $region36: #{tpu_custom_call.1} parent=1 // pred_region
      %s120 = ssub.s32 4096, 4096
      %121 = vsyncadd [#allocation15], %s120
      %s122 = sshll.u32 [#allocation14], 4
      %s123 = int_to_ptr.vmem [resolvable:$true] %s122
      %128 = dma.hbm_to_vmem [thread:$0]  %s8, 4096, %s123, [#allocation15], 128, 128, 8
    $region37: #{tpu_custom_call.1} parent=1 // pred_fallthru
      _
    // Predicated region
    $region38: #{tpu_custom_call.1} parent=1 // pred_check
      _
    $region39: #{tpu_custom_call.1} parent=1 // pred_check_branch
      %130 = sbr.rel (0) target = $region41
    $region40: #{tpu_custom_call.1} parent=1 // pred_region
      %s132 = ssub.s32 16, 16
      %133 = vsyncadd [#allocation15], %s132
      %s135 = sshll.u32 [#allocation16], 4
      %s136 = int_to_ptr.vmem [resolvable:$true] %s135
      %138 = dma.hbm_to_vmem [thread:$0]  %s9, 16, %s136, [#allocation15]
    $region41: #{tpu_custom_call.1} parent=1 // pred_fallthru
      _
    // Predicated region
    $region42: #{tpu_custom_call.1} parent=1 // pred_check
      _
    $region43: #{tpu_custom_call.1} parent=1 // pred_check_branch
      %140 = sbr.rel (0) target = $region45
    $region44: #{tpu_custom_call.1} parent=1 // pred_region
      %s142 = ssub.s32 8192, 8192
      %143 = vsyncadd [#allocation18], %s142
      %s144 = sshll.u32 [#allocation17], 4
      %s145 = int_to_ptr.vmem [resolvable:$true] %s144
      %150 = dma.hbm_to_vmem [thread:$0]  %s10, 8192, %s145, [#allocation18], 512, 512, 32
    $region45: #{tpu_custom_call.1} parent=1 // pred_fallthru
      _
    // Predicated region
    $region46: #{tpu_custom_call.1} parent=1 // pred_check
      _
    $region47: #{tpu_custom_call.1} parent=1 // pred_check_branch
      %152 = sbr.rel (0) target = $region49
    $region48: #{tpu_custom_call.1} parent=1 // pred_region
      _
    $region49: #{tpu_custom_call.1} parent=1 // pred_fallthru
      _
    // Predicated region
    $region50: #{tpu_custom_call.1} parent=1 // pred_check
      _
    $region51: #{tpu_custom_call.1} parent=1 // pred_check_branch
      %154 = sbr.rel (0) target = $region53
    $region52: #{tpu_custom_call.1} parent=1 // pred_region
      _
    $region53: #{tpu_custom_call.1} parent=1 // pred_fallthru
      _
    // Predicated region
    $region54: #{tpu_custom_call.1} parent=1 // pred_check
      _
    $region55: #{tpu_custom_call.1} parent=1 // pred_check_branch
      %156 = sbr.rel (0) target = $region57
    $region56: #{tpu_custom_call.1} parent=1 // pred_region
      _
    $region57: #{tpu_custom_call.1} parent=1 // pred_fallthru
      _
    // Predicated region
    $region58: #{tpu_custom_call.1} parent=1 // pred_check
      _
    $region59: #{tpu_custom_call.1} parent=1 // pred_check_branch
      %158 = sbr.rel (0) target = $region61
    $region60: #{tpu_custom_call.1} parent=1 // pred_region
      %s160 = ssub.s32 16384, 16384
      %161 = vsyncadd [#allocation18], %s160
      %s162 = sshll.u32 [#allocation19], 4
      %s163 = int_to_ptr.vmem [resolvable:$true] %s162
      %168 = dma.hbm_to_vmem [thread:$0]  %s14, 16384, %s163, [#allocation18], 256, 256, 16
    $region61: #{tpu_custom_call.1} parent=1 // pred_fallthru
      _
    // Predicated region
    $region62: #{tpu_custom_call.1} parent=1 // pred_check
      _
    $region63: #{tpu_custom_call.1} parent=1 // pred_check_branch
      %170 = sbr.rel (0) target = $region65
    $region64: #{tpu_custom_call.1} parent=1 // pred_region
      _
    $region65: #{tpu_custom_call.1} parent=1 // pred_fallthru
      _
    // Predicated region
    $region66: #{tpu_custom_call.1} parent=1 // pred_check
      _
    $region67: #{tpu_custom_call.1} parent=1 // pred_check_branch
      %172 = sbr.rel (0) target = $region69
    $region68: #{tpu_custom_call.1} parent=1 // pred_region
      _
    $region69: #{tpu_custom_call.1} parent=1 // pred_fallthru
      _
    // Predicated region
    $region70: #{tpu_custom_call.1} parent=1 // pred_check
      _
    $region71: #{tpu_custom_call.1} parent=1 // pred_check_branch
      %174 = sbr.rel (0) target = $region73
    $region72: #{tpu_custom_call.1} parent=1 // pred_region
      _
    $region73: #{tpu_custom_call.1} parent=1 // pred_fallthru
      _
    // Predicated region
    $region74: #{tpu_custom_call.1} parent=1 // pred_check
      _
    $region75: #{tpu_custom_call.1} parent=1 // pred_check_branch
      %176 = sbr.rel (0) target = $region77
    $region76: #{tpu_custom_call.1} parent=1 // pred_region
      %s178 = ssub.s32 4096, 4096
      %179 = vsyncadd [#allocation21], %s178
      %s180 = sshll.u32 [#allocation20], 4
      %s181 = int_to_ptr.vmem [resolvable:$true] %s180
      %186 = dma.hbm_to_vmem [thread:$0]  %s18, 4096, %s181, [#allocation21], 128, 128, 8
    $region77: #{tpu_custom_call.1} parent=1 // pred_fallthru
      _
    // Predicated region
    $region78: #{tpu_custom_call.1} parent=1 // pred_check
      _
    $region79: #{tpu_custom_call.1} parent=1 // pred_check_branch
      %188 = sbr.rel (0) target = $region81
    $region80: #{tpu_custom_call.1} parent=1 // pred_region
      _
    $region81: #{tpu_custom_call.1} parent=1 // pred_fallthru
      _
    // Predicated region
    $region82: #{tpu_custom_call.1} parent=1 // pred_check
      _
    $region83: #{tpu_custom_call.1} parent=1 // pred_check_branch
      %190 = sbr.rel (0) target = $region85
    $region84: #{tpu_custom_call.1} parent=1 // pred_region
      %191 = dma.done [#allocation3], 256
    $region85: #{tpu_custom_call.1} parent=1 // pred_fallthru
      _
    // Predicated region
    $region86: #{tpu_custom_call.1} parent=1 // pred_check
      _
    $region87: #{tpu_custom_call.1} parent=1 // pred_check_branch
      %193 = sbr.rel (0) target = $region89
    $region88: #{tpu_custom_call.1} parent=1 // pred_region
      %194 = dma.done [#allocation6], 4096
    $region89: #{tpu_custom_call.1} parent=1 // pred_fallthru
      _
    // Predicated region
    $region90: #{tpu_custom_call.1} parent=1 // pred_check
      _
    $region91: #{tpu_custom_call.1} parent=1 // pred_check_branch
      %196 = sbr.rel (0) target = $region93
    $region92: #{tpu_custom_call.1} parent=1 // pred_region
      %197 = dma.done [#allocation6], 4096
    $region93: #{tpu_custom_call.1} parent=1 // pred_fallthru
      _
    // Predicated region
    $region94: #{tpu_custom_call.1} parent=1 // pred_check
      _
    $region95: #{tpu_custom_call.1} parent=1 // pred_check_branch
      %199 = sbr.rel (0) target = $region97
    $region96: #{tpu_custom_call.1} parent=1 // pred_region
      %200 = dma.done [#allocation9], 16384
    $region97: #{tpu_custom_call.1} parent=1 // pred_fallthru
      _
    // Predicated region
    $region98: #{tpu_custom_call.1} parent=1 // pred_check
      _
    $region99: #{tpu_custom_call.1} parent=1 // pred_check_branch
      %202 = sbr.rel (0) target = $region101
    $region100: #{tpu_custom_call.1} parent=1 // pred_region
      %203 = dma.done [#allocation9], 16384
    $region101: #{tpu_custom_call.1} parent=1 // pred_fallthru
      _
    // Predicated region
    $region102: #{tpu_custom_call.1} parent=1 // pred_check
      _
    $region103: #{tpu_custom_call.1} parent=1 // pred_check_branch
      %205 = sbr.rel (0) target = $region105
    $region104: #{tpu_custom_call.1} parent=1 // pred_region
      %206 = dma.done [#allocation12], 32
    $region105: #{tpu_custom_call.1} parent=1 // pred_fallthru
      _
    // Predicated region
    $region106: #{tpu_custom_call.1} parent=1 // pred_check
      _
    $region107: #{tpu_custom_call.1} parent=1 // pred_check_branch
      %208 = sbr.rel (0) target = $region109
    $region108: #{tpu_custom_call.1} parent=1 // pred_region
      %209 = dma.done [#allocation12], 4096
    $region109: #{tpu_custom_call.1} parent=1 // pred_fallthru
      _
    // Predicated region
    $region110: #{tpu_custom_call.1} parent=1 // pred_check
      _
    $region111: #{tpu_custom_call.1} parent=1 // pred_check_branch
      %211 = sbr.rel (0) target = $region113
    $region112: #{tpu_custom_call.1} parent=1 // pred_region
      %212 = dma.done [#allocation15], 4096
    $region113: #{tpu_custom_call.1} parent=1 // pred_fallthru
      _
    // Predicated region
    $region114: #{tpu_custom_call.1} parent=1 // pred_check
      _
    $region115: #{tpu_custom_call.1} parent=1 // pred_check_branch
      %214 = sbr.rel (0) target = $region117
    $region116: #{tpu_custom_call.1} parent=1 // pred_region
      %215 = dma.done [#allocation15], 16
    $region117: #{tpu_custom_call.1} parent=1 // pred_fallthru
      _
    // Predicated region
    $region118: #{tpu_custom_call.1} parent=1 // pred_check
      _
    $region119: #{tpu_custom_call.1} parent=1 // pred_check_branch
      %217 = sbr.rel (0) target = $region121
    $region120: #{tpu_custom_call.1} parent=1 // pred_region
      %218 = dma.done [#allocation18], 8192
    $region121: #{tpu_custom_call.1} parent=1 // pred_fallthru
      _
    // Predicated region
    $region122: #{tpu_custom_call.1} parent=1 // pred_check
      _
    $region123: #{tpu_custom_call.1} parent=1 // pred_check_branch
      %220 = sbr.rel (0) target = $region125
    $region124: #{tpu_custom_call.1} parent=1 // pred_region
      %221 = dma.done [#allocation18], 16384
    $region125: #{tpu_custom_call.1} parent=1 // pred_fallthru
      _
    // Predicated region
    $region126: #{tpu_custom_call.1} parent=1 // pred_check
      _
    $region127: #{tpu_custom_call.1} parent=1 // pred_check_branch
      %223 = sbr.rel (0) target = $region129
    $region128: #{tpu_custom_call.1} parent=1 // pred_region
      %224 = dma.done [#allocation21], 4096
    $region129: #{tpu_custom_call.1} parent=1 // pred_fallthru
      _
    %v225 = vld [vmem:[#allocation2] sm:$0xff]
    %v226 = vld [vmem:[#allocation2 + $0x8] sm:$0xff]
    %v227 = vld [vmem:[#allocation5] sm:$0xff]
    %v228 = vld [vmem:[#allocation5 + $0x8] sm:$0xff]
    %v229 = vld [vmem:[#allocation5 + $0x10] sm:$0xff]
    %v230 = vld [vmem:[#allocation5 + $0x18] sm:$0xff]
    %v231 = vld [vmem:[#allocation5 + $0x20] sm:$0xff]
    %v232 = vld [vmem:[#allocation5 + $0x28] sm:$0xff]
    %v233 = vld [vmem:[#allocation5 + $0x30] sm:$0xff]
    %v234 = vld [vmem:[#allocation5 + $0x38] sm:$0xff]
    %v235 = vld [vmem:[#allocation5 + $0x40] sm:$0xff]
    %v236 = vld [vmem:[#allocation5 + $0x48] sm:$0xff]
    %v237 = vld [vmem:[#allocation5 + $0x50] sm:$0xff]
    %v238 = vld [vmem:[#allocation5 + $0x58] sm:$0xff]
    %v239 = vld [vmem:[#allocation5 + $0x60] sm:$0xff]
    %v240 = vld [vmem:[#allocation5 + $0x68] sm:$0xff]
    %v241 = vld [vmem:[#allocation5 + $0x70] sm:$0xff]
    %v242 = vld [vmem:[#allocation5 + $0x78] sm:$0xff]
    %v243 = vld [vmem:[#allocation5 + $0x80] sm:$0xff]
    %v244 = vld [vmem:[#allocation5 + $0x88] sm:$0xff]
    %v245 = vld [vmem:[#allocation5 + $0x90] sm:$0xff]
    %v246 = vld [vmem:[#allocation5 + $0x98] sm:$0xff]
    %v247 = vld [vmem:[#allocation5 + $0xa0] sm:$0xff]
    %v248 = vld [vmem:[#allocation5 + $0xa8] sm:$0xff]
    %v249 = vld [vmem:[#allocation5 + $0xb0] sm:$0xff]
    %v250 = vld [vmem:[#allocation5 + $0xb8] sm:$0xff]
    %v251 = vld [vmem:[#allocation5 + $0xc0] sm:$0xff]
    %v252 = vld [vmem:[#allocation5 + $0xc8] sm:$0xff]
    %v253 = vld [vmem:[#allocation5 + $0xd0] sm:$0xff]
    %v254 = vld [vmem:[#allocation5 + $0xd8] sm:$0xff]
    %v255 = vld [vmem:[#allocation5 + $0xe0] sm:$0xff]
    %v256 = vld [vmem:[#allocation5 + $0xe8] sm:$0xff]
    %v257 = vld [vmem:[#allocation5 + $0xf0] sm:$0xff]
    %v258 = vld [vmem:[#allocation5 + $0xf8] sm:$0xff]
    %v259 = vrot.slane %v225, 1
    %v260 = vrot.slane %v226, 1
    %v261 = vlaneseq
    %v262 = vshrl.u32 %v261, 7
    %vm263 = vcmp.lt.s32.totalorder %v262, 7
    %v264 = vsel %vm263, %v259, %v260
    %v265 = vsel %vm263, %v260, %v259
    %v266 = vld [vmem:[#allocation7] sm:$0xff]
    %v267 = vld [vmem:[#allocation7 + $0x8] sm:$0xff]
    %v268 = vld [vmem:[#allocation7 + $0x10] sm:$0xff]
    %v269 = vld [vmem:[#allocation7 + $0x18] sm:$0xff]
    %v270 = vld [vmem:[#allocation7 + $0x20] sm:$0xff]
    %v271 = vld [vmem:[#allocation7 + $0x28] sm:$0xff]
    %v272 = vld [vmem:[#allocation7 + $0x30] sm:$0xff]
    %v273 = vld [vmem:[#allocation7 + $0x38] sm:$0xff]
    %v274 = vld [vmem:[#allocation7 + $0x40] sm:$0xff]
    %v275 = vld [vmem:[#allocation7 + $0x48] sm:$0xff]
    %v276 = vld [vmem:[#allocation7 + $0x50] sm:$0xff]
    %v277 = vld [vmem:[#allocation7 + $0x58] sm:$0xff]
    %v278 = vld [vmem:[#allocation7 + $0x60] sm:$0xff]
    %v279 = vld [vmem:[#allocation7 + $0x68] sm:$0xff]
    %v280 = vld [vmem:[#allocation7 + $0x70] sm:$0xff]
    %v281 = vld [vmem:[#allocation7 + $0x78] sm:$0xff]
    %v282 = vld [vmem:[#allocation7 + $0x80] sm:$0xff]
    %v283 = vld [vmem:[#allocation7 + $0x88] sm:$0xff]
    %v284 = vld [vmem:[#allocation7 + $0x90] sm:$0xff]
    %v285 = vld [vmem:[#allocation7 + $0x98] sm:$0xff]
    %v286 = vld [vmem:[#allocation7 + $0xa0] sm:$0xff]
    %v287 = vld [vmem:[#allocation7 + $0xa8] sm:$0xff]
    %v288 = vld [vmem:[#allocation7 + $0xb0] sm:$0xff]
    %v289 = vld [vmem:[#allocation7 + $0xb8] sm:$0xff]
    %v290 = vld [vmem:[#allocation7 + $0xc0] sm:$0xff]
    %v291 = vld [vmem:[#allocation7 + $0xc8] sm:$0xff]
    %v292 = vld [vmem:[#allocation7 + $0xd0] sm:$0xff]
    %v293 = vld [vmem:[#allocation7 + $0xd8] sm:$0xff]
    %v294 = vld [vmem:[#allocation7 + $0xe0] sm:$0xff]
    %v295 = vld [vmem:[#allocation7 + $0xe8] sm:$0xff]
    %v296 = vld [vmem:[#allocation7 + $0xf0] sm:$0xff]
    %v297 = vld [vmem:[#allocation7 + $0xf8] sm:$0xff]
    %vm298 = vcmask 523264
    %v300 = vsel %vm298, %v264, 0
    %v303 = vsel %vm298, %v265, 0
    %305 = vmatprep.subr.mxu0 0.0
    %306 = vmatpush1.msra.mxu0 0.0
    %307 = vmatprep.subr.mxu0 0.0
    %308 = vmatpush1.msra.mxu0 0.0
    %309 = vmatprep.subr.mxu0 0.0
    %310 = vmatpush1.msra.mxu0 0.0
    %311 = vmatprep.subr.mxu0 0.0
    %312 = vmatpush1.msra.mxu0 0.0
    %313 = vmatprep.subr.mxu0 0.0
    %314 = vmatpush1.msra.mxu0 0.0
    %315 = vmatprep.subr.mxu0 0.0
    %316 = vmatpush1.msra.mxu0 0.0
    %317 = vmatprep.subr.mxu0 0.0
    %318 = vmatpush1.msra.mxu0 0.0
    %319 = vmatprep.subr.mxu0 0.0
    %320 = vmatpush1.msra.mxu0 0.0
    %321 = vmatprep.subr.mxu0 %v295
    %322 = vmatpush1.msra.mxu0 %v294
    %323 = vmatprep.subr.mxu0 %v291
    %324 = vmatpush1.msra.mxu0 %v290
    %325 = vmatprep.subr.mxu0 %v287
    %326 = vmatpush1.msra.mxu0 %v286
    %327 = vmatprep.subr.mxu0 %v283
    %328 = vmatpush1.msra.mxu0 %v282
    %329 = vmatprep.subr.mxu0 %v279
    %330 = vmatpush1.msra.mxu0 %v278
    %331 = vmatprep.subr.mxu0 %v275
    %332 = vmatpush1.msra.mxu0 %v274
    %333 = vmatprep.subr.mxu0 %v271
    %334 = vmatpush1.msra.mxu0 %v270
    %335 = vmatprep.subr.mxu0 %v267
    %336 = vmatpush1.msra.mxu0 %v266
    %337 = vmatprep.subr.mxu0 0.0
    %338 = vmatpush2.msra.mxu0 0.0
    %339 = vmatprep.subr.mxu0 0.0
    %340 = vmatpush2.msra.mxu0 0.0
    %341 = vmatprep.subr.mxu0 0.0
    %342 = vmatpush2.msra.mxu0 0.0
    %343 = vmatprep.subr.mxu0 0.0
    %344 = vmatpush2.msra.mxu0 0.0
    %345 = vmatprep.subr.mxu0 0.0
    %346 = vmatpush2.msra.mxu0 0.0
    %347 = vmatprep.subr.mxu0 0.0
    %348 = vmatpush2.msra.mxu0 0.0
    %349 = vmatprep.subr.mxu0 0.0
    %350 = vmatpush2.msra.mxu0 0.0
    %351 = vmatprep.subr.mxu0 0.0
    %352 = vmatpush2.msra.mxu0 0.0
    %353 = vmatprep.subr.mxu0 0.0
    %354 = vmatpush2.msra.mxu0 0.0
    %355 = vmatprep.subr.mxu0 0.0
    %356 = vmatpush2.msra.mxu0 0.0
    %357 = vmatprep.subr.mxu0 0.0
    %358 = vmatpush2.msra.mxu0 0.0
    %359 = vmatprep.subr.mxu0 0.0
    %360 = vmatpush2.msra.mxu0 0.0
    %361 = vmatprep.subr.mxu0 0.0
    %362 = vmatpush2.msra.mxu0 0.0
    %363 = vmatprep.subr.mxu0 0.0
    %364 = vmatpush2.msra.mxu0 0.0
    %365 = vmatprep.subr.mxu0 0.0
    %366 = vmatpush2.msra.mxu0 0.0
    %367 = vmatprep.subr.mxu0 0.0
    %368 = vmatpush2.msra.mxu0 0.0
    %369 = vmatprep.mubr.f32.mxu0 0.0
    %370 = vmatmul.mubr.f32.gmra.mxu0 %v300
    %v371 = vpop.f32.mrf.mxu0
    %v372 = vadd.f32 0.0, %v371
    %v373 = vpop.f32.mrf.mxu0
    %v374 = vadd.f32 0.0, %v373
    %375 = vmatprep.mubr.f32.mxu0 0.0
    %376 = vmatmul.mubr.f32.gmra.mxu0 %v303
    %v377 = vpop.f32.mrf.mxu0
    %v378 = vadd.f32 0.0, %v377
    %v379 = vpop.f32.mrf.mxu0
    %v380 = vadd.f32 0.0, %v379
    %381 = vdwg.mxu0
    %382 = vmatprep.subr.mxu0 0.0
    %383 = vmatpush1.msra.mxu0 0.0
    %384 = vmatprep.subr.mxu0 0.0
    %385 = vmatpush1.msra.mxu0 0.0
    %386 = vmatprep.subr.mxu0 0.0
    %387 = vmatpush1.msra.mxu0 0.0
    %388 = vmatprep.subr.mxu0 0.0
    %389 = vmatpush1.msra.mxu0 0.0
    %390 = vmatprep.subr.mxu0 0.0
    %391 = vmatpush1.msra.mxu0 0.0
    %392 = vmatprep.subr.mxu0 0.0
    %393 = vmatpush1.msra.mxu0 0.0
    %394 = vmatprep.subr.mxu0 0.0
    %395 = vmatpush1.msra.mxu0 0.0
    %396 = vmatprep.subr.mxu0 0.0
    %397 = vmatpush1.msra.mxu0 0.0
    %398 = vmatprep.subr.mxu0 %v297
    %399 = vmatpush1.msra.mxu0 %v296
    %400 = vmatprep.subr.mxu0 %v293
    %401 = vmatpush1.msra.mxu0 %v292
    %402 = vmatprep.subr.mxu0 %v289
    %403 = vmatpush1.msra.mxu0 %v288
    %404 = vmatprep.subr.mxu0 %v285
    %405 = vmatpush1.msra.mxu0 %v284
    %406 = vmatprep.subr.mxu0 %v281
    %407 = vmatpush1.msra.mxu0 %v280
    %408 = vmatprep.subr.mxu0 %v277
    %409 = vmatpush1.msra.mxu0 %v276
    %410 = vmatprep.subr.mxu0 %v273
    %411 = vmatpush1.msra.mxu0 %v272
    %412 = vmatprep.subr.mxu0 %v269
    %413 = vmatpush1.msra.mxu0 %v268
    %414 = vmatprep.subr.mxu0 0.0
    %415 = vmatpush2.msra.mxu0 0.0
    %416 = vmatprep.subr.mxu0 0.0
    %417 = vmatpush2.msra.mxu0 0.0
    %418 = vmatprep.subr.mxu0 0.0
    %419 = vmatpush2.msra.mxu0 0.0
    %420 = vmatprep.subr.mxu0 0.0
    %421 = vmatpush2.msra.mxu0 0.0
    %422 = vmatprep.subr.mxu0 0.0
    %423 = vmatpush2.msra.mxu0 0.0
    %424 = vmatprep.subr.mxu0 0.0
    %425 = vmatpush2.msra.mxu0 0.0
    %426 = vmatprep.subr.mxu0 0.0
    %427 = vmatpush2.msra.mxu0 0.0
    %428 = vmatprep.subr.mxu0 0.0
    %429 = vmatpush2.msra.mxu0 0.0
    %430 = vmatprep.subr.mxu0 0.0
    %431 = vmatpush2.msra.mxu0 0.0
    %432 = vmatprep.subr.mxu0 0.0
    %433 = vmatpush2.msra.mxu0 0.0
    %434 = vmatprep.subr.mxu0 0.0
    %435 = vmatpush2.msra.mxu0 0.0
    %436 = vmatprep.subr.mxu0 0.0
    %437 = vmatpush2.msra.mxu0 0.0
    %438 = vmatprep.subr.mxu0 0.0
    %439 = vmatpush2.msra.mxu0 0.0
    %440 = vmatprep.subr.mxu0 0.0
    %441 = vmatpush2.msra.mxu0 0.0
    %442 = vmatprep.subr.mxu0 0.0
    %443 = vmatpush2.msra.mxu0 0.0
    %444 = vmatprep.subr.mxu0 0.0
    %445 = vmatpush2.msra.mxu0 0.0
    %446 = vmatprep.mubr.f32.mxu0 0.0
    %447 = vmatmul.mubr.f32.gmra.mxu0 %v300
    %v448 = vpop.f32.mrf.mxu0
    %v449 = vadd.f32 0.0, %v448
    %v450 = vpop.f32.mrf.mxu0
    %v451 = vadd.f32 0.0, %v450
    %452 = vmatprep.mubr.f32.mxu0 0.0
    %453 = vmatmul.mubr.f32.gmra.mxu0 %v303
    %v454 = vpop.f32.mrf.mxu0
    %v455 = vadd.f32 0.0, %v454
    %v456 = vpop.f32.mrf.mxu0
    %v457 = vadd.f32 0.0, %v456
    %458 = vdwg.mxu0
    %v460 = vsel %vm298, %v225, 0
    %v463 = vsel %vm298, %v226, 0
    %465 = vmatprep.subr.mxu0 0.0
    %466 = vmatpush1.msra.mxu0 0.0
    %467 = vmatprep.subr.mxu0 0.0
    %468 = vmatpush1.msra.mxu0 0.0
    %469 = vmatprep.subr.mxu0 0.0
    %470 = vmatpush1.msra.mxu0 0.0
    %471 = vmatprep.subr.mxu0 0.0
    %472 = vmatpush1.msra.mxu0 0.0
    %473 = vmatprep.subr.mxu0 0.0
    %474 = vmatpush1.msra.mxu0 0.0
    %475 = vmatprep.subr.mxu0 0.0
    %476 = vmatpush1.msra.mxu0 0.0
    %477 = vmatprep.subr.mxu0 0.0
    %478 = vmatpush1.msra.mxu0 0.0
    %479 = vmatprep.subr.mxu0 0.0
    %480 = vmatpush1.msra.mxu0 0.0
    %481 = vmatprep.subr.mxu0 %v256
    %482 = vmatpush1.msra.mxu0 %v255
    %483 = vmatprep.subr.mxu0 %v252
    %484 = vmatpush1.msra.mxu0 %v251
    %485 = vmatprep.subr.mxu0 %v248
    %486 = vmatpush1.msra.mxu0 %v247
    %487 = vmatprep.subr.mxu0 %v244
    %488 = vmatpush1.msra.mxu0 %v243
    %489 = vmatprep.subr.mxu0 %v240
    %490 = vmatpush1.msra.mxu0 %v239
    %491 = vmatprep.subr.mxu0 %v236
    %492 = vmatpush1.msra.mxu0 %v235
    %493 = vmatprep.subr.mxu0 %v232
    %494 = vmatpush1.msra.mxu0 %v231
    %495 = vmatprep.subr.mxu0 %v228
    %496 = vmatpush1.msra.mxu0 %v227
    %497 = vmatprep.subr.mxu0 0.0
    %498 = vmatpush2.msra.mxu0 0.0
    %499 = vmatprep.subr.mxu0 0.0
    %500 = vmatpush2.msra.mxu0 0.0
    %501 = vmatprep.subr.mxu0 0.0
    %502 = vmatpush2.msra.mxu0 0.0
    %503 = vmatprep.subr.mxu0 0.0
    %504 = vmatpush2.msra.mxu0 0.0
    %505 = vmatprep.subr.mxu0 0.0
    %506 = vmatpush2.msra.mxu0 0.0
    %507 = vmatprep.subr.mxu0 0.0
    %508 = vmatpush2.msra.mxu0 0.0
    %509 = vmatprep.subr.mxu0 0.0
    %510 = vmatpush2.msra.mxu0 0.0
    %511 = vmatprep.subr.mxu0 0.0
    %512 = vmatpush2.msra.mxu0 0.0
    %513 = vmatprep.subr.mxu0 0.0
    %514 = vmatpush2.msra.mxu0 0.0
    %515 = vmatprep.subr.mxu0 0.0
    %516 = vmatpush2.msra.mxu0 0.0
    %517 = vmatprep.subr.mxu0 0.0
    %518 = vmatpush2.msra.mxu0 0.0
    %519 = vmatprep.subr.mxu0 0.0
    %520 = vmatpush2.msra.mxu0 0.0
    %521 = vmatprep.subr.mxu0 0.0
    %522 = vmatpush2.msra.mxu0 0.0
    %523 = vmatprep.subr.mxu0 0.0
    %524 = vmatpush2.msra.mxu0 0.0
    %525 = vmatprep.subr.mxu0 0.0
    %526 = vmatpush2.msra.mxu0 0.0
    %527 = vmatprep.subr.mxu0 0.0
    %528 = vmatpush2.msra.mxu0 0.0
    %529 = vmatprep.mubr.f32.mxu0 0.0
    %530 = vmatmul.mubr.f32.gmra.mxu0 %v460
    %v531 = vpop.f32.mrf.mxu0
    %v532 = vadd.f32 %v372, %v531
    %v533 = vpop.f32.mrf.mxu0
    %v534 = vadd.f32 %v374, %v533
    %535 = vmatprep.mubr.f32.mxu0 0.0
    %536 = vmatmul.mubr.f32.gmra.mxu0 %v463
    %v537 = vpop.f32.mrf.mxu0
    %v538 = vadd.f32 %v378, %v537
    %v539 = vpop.f32.mrf.mxu0
    %v540 = vadd.f32 %v380, %v539
    %541 = vdwg.mxu0
    %542 = vmatprep.subr.mxu0 0.0
    %543 = vmatpush1.msra.mxu0 0.0
    %544 = vmatprep.subr.mxu0 0.0
    %545 = vmatpush1.msra.mxu0 0.0
    %546 = vmatprep.subr.mxu0 0.0
    %547 = vmatpush1.msra.mxu0 0.0
    %548 = vmatprep.subr.mxu0 0.0
    %549 = vmatpush1.msra.mxu0 0.0
    %550 = vmatprep.subr.mxu0 0.0
    %551 = vmatpush1.msra.mxu0 0.0
    %552 = vmatprep.subr.mxu0 0.0
    %553 = vmatpush1.msra.mxu0 0.0
    %554 = vmatprep.subr.mxu0 0.0
    %555 = vmatpush1.msra.mxu0 0.0
    %556 = vmatprep.subr.mxu0 0.0
    %557 = vmatpush1.msra.mxu0 0.0
    %558 = vmatprep.subr.mxu0 %v258
    %559 = vmatpush1.msra.mxu0 %v257
    %560 = vmatprep.subr.mxu0 %v254
    %561 = vmatpush1.msra.mxu0 %v253
    %562 = vmatprep.subr.mxu0 %v250
    %563 = vmatpush1.msra.mxu0 %v249
    %564 = vmatprep.subr.mxu0 %v246
    %565 = vmatpush1.msra.mxu0 %v245
    %566 = vmatprep.subr.mxu0 %v242
    %567 = vmatpush1.msra.mxu0 %v241
    %568 = vmatprep.subr.mxu0 %v238
    %569 = vmatpush1.msra.mxu0 %v237
    %570 = vmatprep.subr.mxu0 %v234
    %571 = vmatpush1.msra.mxu0 %v233
    %572 = vmatprep.subr.mxu0 %v230
    %573 = vmatpush1.msra.mxu0 %v229
    %574 = vmatprep.subr.mxu0 0.0
    %575 = vmatpush2.msra.mxu0 0.0
    %576 = vmatprep.subr.mxu0 0.0
    %577 = vmatpush2.msra.mxu0 0.0
    %578 = vmatprep.subr.mxu0 0.0
    %579 = vmatpush2.msra.mxu0 0.0
    %580 = vmatprep.subr.mxu0 0.0
    %581 = vmatpush2.msra.mxu0 0.0
    %582 = vmatprep.subr.mxu0 0.0
    %583 = vmatpush2.msra.mxu0 0.0
    %584 = vmatprep.subr.mxu0 0.0
    %585 = vmatpush2.msra.mxu0 0.0
    %586 = vmatprep.subr.mxu0 0.0
    %587 = vmatpush2.msra.mxu0 0.0
    %588 = vmatprep.subr.mxu0 0.0
    %589 = vmatpush2.msra.mxu0 0.0
    %590 = vmatprep.subr.mxu0 0.0
    %591 = vmatpush2.msra.mxu0 0.0
    %592 = vmatprep.subr.mxu0 0.0
    %593 = vmatpush2.msra.mxu0 0.0
    %594 = vmatprep.subr.mxu0 0.0
    %595 = vmatpush2.msra.mxu0 0.0
    %596 = vmatprep.subr.mxu0 0.0
    %597 = vmatpush2.msra.mxu0 0.0
    %598 = vmatprep.subr.mxu0 0.0
    %599 = vmatpush2.msra.mxu0 0.0
    %600 = vmatprep.subr.mxu0 0.0
    %601 = vmatpush2.msra.mxu0 0.0
    %602 = vmatprep.subr.mxu0 0.0
    %603 = vmatpush2.msra.mxu0 0.0
    %604 = vmatprep.subr.mxu0 0.0
    %605 = vmatpush2.msra.mxu0 0.0
    %606 = vmatprep.mubr.f32.mxu0 0.0
    %607 = vmatmul.mubr.f32.gmra.mxu0 %v460
    %v608 = vpop.f32.mrf.mxu0
    %v609 = vadd.f32 %v449, %v608
    %v610 = vpop.f32.mrf.mxu0
    %v611 = vadd.f32 %v451, %v610
    %612 = vmatprep.mubr.f32.mxu0 0.0
    %613 = vmatmul.mubr.f32.gmra.mxu0 %v463
    %v614 = vpop.f32.mrf.mxu0
    %v615 = vadd.f32 %v455, %v614
    %v616 = vpop.f32.mrf.mxu0
    %v617 = vadd.f32 %v457, %v616
    %618 = vdwg.mxu0
    %v619 = vld [vmem:[%s3] sm:$0xf]
    %v621 = vlaneseq
    %v622 = vshrl.u32 %v621, 7
    %v623 = vsub.s32 0, %v622
    %v624 = vrot.slane %v619, %v623
    %v625 = vlaneseq
    %v626 = vshrl.u32 %v625, 7
    %v627 = vsub.s32 1, %v626
    %v628 = vrot.slane %v619, %v627
    %v629 = vlaneseq
    %v630 = vshrl.u32 %v629, 7
    %v631 = vsub.s32 2, %v630
    %v632 = vrot.slane %v619, %v631
    %v633 = vlaneseq
    %v634 = vshrl.u32 %v633, 7
    %v635 = vsub.s32 3, %v634
    %v636 = vrot.slane %v619, %v635
    %v641 = vadd.f32 %v532, %v624
    %v642 = vadd.f32 %v534, %v628
    %v643 = vadd.f32 %v609, %v632
    %v644 = vadd.f32 %v611, %v636
    %v645 = vadd.f32 %v538, %v624
    %v646 = vadd.f32 %v540, %v628
    %v647 = vadd.f32 %v615, %v632
    %v648 = vadd.f32 %v617, %v636
    %v649 = vmax.f32 %v641, 0.0
    %v650 = vmax.f32 %v642, 0.0
    %v651 = vmax.f32 %v643, 0.0
    %v652 = vmax.f32 %v644, 0.0
    %v653 = vmax.f32 %v645, 0.0
    %v654 = vmax.f32 %v646, 0.0
    %v655 = vmax.f32 %v647, 0.0
    %v656 = vmax.f32 %v648, 0.0
    %v657 = vld [vmem:[#allocation8] sm:$0xff]
    %v658 = vld [vmem:[#allocation8 + $0x8] sm:$0xff]
    %v659 = vld [vmem:[#allocation8 + $0x10] sm:$0xff]
    %v660 = vld [vmem:[#allocation8 + $0x18] sm:$0xff]
    %v661 = vld [vmem:[#allocation8 + $0x20] sm:$0xff]
    %v662 = vld [vmem:[#allocation8 + $0x28] sm:$0xff]
    %v663 = vld [vmem:[#allocation8 + $0x30] sm:$0xff]
    %v664 = vld [vmem:[#allocation8 + $0x38] sm:$0xff]
    %v665 = vld [vmem:[#allocation8 + $0x40] sm:$0xff]
    %v666 = vld [vmem:[#allocation8 + $0x48] sm:$0xff]
    %v667 = vld [vmem:[#allocation8 + $0x50] sm:$0xff]
    %v668 = vld [vmem:[#allocation8 + $0x58] sm:$0xff]
    %v669 = vld [vmem:[#allocation8 + $0x60] sm:$0xff]
    %v670 = vld [vmem:[#allocation8 + $0x68] sm:$0xff]
    %v671 = vld [vmem:[#allocation8 + $0x70] sm:$0xff]
    %v672 = vld [vmem:[#allocation8 + $0x78] sm:$0xff]
    %v673 = vld [vmem:[#allocation8 + $0x80] sm:$0xff]
    %v674 = vld [vmem:[#allocation8 + $0x88] sm:$0xff]
    %v675 = vld [vmem:[#allocation8 + $0x90] sm:$0xff]
    %v676 = vld [vmem:[#allocation8 + $0x98] sm:$0xff]
    %v677 = vld [vmem:[#allocation8 + $0xa0] sm:$0xff]
    %v678 = vld [vmem:[#allocation8 + $0xa8] sm:$0xff]
    %v679 = vld [vmem:[#allocation8 + $0xb0] sm:$0xff]
    %v680 = vld [vmem:[#allocation8 + $0xb8] sm:$0xff]
    %v681 = vld [vmem:[#allocation8 + $0xc0] sm:$0xff]
    %v682 = vld [vmem:[#allocation8 + $0xc8] sm:$0xff]
    %v683 = vld [vmem:[#allocation8 + $0xd0] sm:$0xff]
    %v684 = vld [vmem:[#allocation8 + $0xd8] sm:$0xff]
    %v685 = vld [vmem:[#allocation8 + $0xe0] sm:$0xff]
    %v686 = vld [vmem:[#allocation8 + $0xe8] sm:$0xff]
    %v687 = vld [vmem:[#allocation8 + $0xf0] sm:$0xff]
    %v688 = vld [vmem:[#allocation8 + $0xf8] sm:$0xff]
    %v689 = vld [vmem:[#allocation8 + $0x100] sm:$0xff]
    %v690 = vld [vmem:[#allocation8 + $0x108] sm:$0xff]
    %v691 = vld [vmem:[#allocation8 + $0x110] sm:$0xff]
    %v692 = vld [vmem:[#allocation8 + $0x118] sm:$0xff]
    %v693 = vld [vmem:[#allocation8 + $0x120] sm:$0xff]
    %v694 = vld [vmem:[#allocation8 + $0x128] sm:$0xff]
    %v695 = vld [vmem:[#allocation8 + $0x130] sm:$0xff]
    %v696 = vld [vmem:[#allocation8 + $0x138] sm:$0xff]
    %v697 = vld [vmem:[#allocation8 + $0x140] sm:$0xff]
    %v698 = vld [vmem:[#allocation8 + $0x148] sm:$0xff]
    %v699 = vld [vmem:[#allocation8 + $0x150] sm:$0xff]
    %v700 = vld [vmem:[#allocation8 + $0x158] sm:$0xff]
    %v701 = vld [vmem:[#allocation8 + $0x160] sm:$0xff]
    %v702 = vld [vmem:[#allocation8 + $0x168] sm:$0xff]
    %v703 = vld [vmem:[#allocation8 + $0x170] sm:$0xff]
    %v704 = vld [vmem:[#allocation8 + $0x178] sm:$0xff]
    %v705 = vld [vmem:[#allocation8 + $0x180] sm:$0xff]
    %v706 = vld [vmem:[#allocation8 + $0x188] sm:$0xff]
    %v707 = vld [vmem:[#allocation8 + $0x190] sm:$0xff]
    %v708 = vld [vmem:[#allocation8 + $0x198] sm:$0xff]
    %v709 = vld [vmem:[#allocation8 + $0x1a0] sm:$0xff]
    %v710 = vld [vmem:[#allocation8 + $0x1a8] sm:$0xff]
    %v711 = vld [vmem:[#allocation8 + $0x1b0] sm:$0xff]
    %v712 = vld [vmem:[#allocation8 + $0x1b8] sm:$0xff]
    %v713 = vld [vmem:[#allocation8 + $0x1c0] sm:$0xff]
    %v714 = vld [vmem:[#allocation8 + $0x1c8] sm:$0xff]
    %v715 = vld [vmem:[#allocation8 + $0x1d0] sm:$0xff]
    %v716 = vld [vmem:[#allocation8 + $0x1d8] sm:$0xff]
    %v717 = vld [vmem:[#allocation8 + $0x1e0] sm:$0xff]
    %v718 = vld [vmem:[#allocation8 + $0x1e8] sm:$0xff]
    %v719 = vld [vmem:[#allocation8 + $0x1f0] sm:$0xff]
    %v720 = vld [vmem:[#allocation8 + $0x1f8] sm:$0xff]
    %v721 = vld [vmem:[#allocation8 + $0x200] sm:$0xff]
    %v722 = vld [vmem:[#allocation8 + $0x208] sm:$0xff]
    %v723 = vld [vmem:[#allocation8 + $0x210] sm:$0xff]
    %v724 = vld [vmem:[#allocation8 + $0x218] sm:$0xff]
    %v725 = vld [vmem:[#allocation8 + $0x220] sm:$0xff]
    %v726 = vld [vmem:[#allocation8 + $0x228] sm:$0xff]
    %v727 = vld [vmem:[#allocation8 + $0x230] sm:$0xff]
    %v728 = vld [vmem:[#allocation8 + $0x238] sm:$0xff]
    %v729 = vld [vmem:[#allocation8 + $0x240] sm:$0xff]
    %v730 = vld [vmem:[#allocation8 + $0x248] sm:$0xff]
    %v731 = vld [vmem:[#allocation8 + $0x250] sm:$0xff]
    %v732 = vld [vmem:[#allocation8 + $0x258] sm:$0xff]
    %v733 = vld [vmem:[#allocation8 + $0x260] sm:$0xff]
    %v734 = vld [vmem:[#allocation8 + $0x268] sm:$0xff]
    %v735 = vld [vmem:[#allocation8 + $0x270] sm:$0xff]
    %v736 = vld [vmem:[#allocation8 + $0x278] sm:$0xff]
    %v737 = vld [vmem:[#allocation8 + $0x280] sm:$0xff]
    %v738 = vld [vmem:[#allocation8 + $0x288] sm:$0xff]
    %v739 = vld [vmem:[#allocation8 + $0x290] sm:$0xff]
    %v740 = vld [vmem:[#allocation8 + $0x298] sm:$0xff]
    %v741 = vld [vmem:[#allocation8 + $0x2a0] sm:$0xff]
    %v742 = vld [vmem:[#allocation8 + $0x2a8] sm:$0xff]
    %v743 = vld [vmem:[#allocation8 + $0x2b0] sm:$0xff]
    %v744 = vld [vmem:[#allocation8 + $0x2b8] sm:$0xff]
    %v745 = vld [vmem:[#allocation8 + $0x2c0] sm:$0xff]
    %v746 = vld [vmem:[#allocation8 + $0x2c8] sm:$0xff]
    %v747 = vld [vmem:[#allocation8 + $0x2d0] sm:$0xff]
    %v748 = vld [vmem:[#allocation8 + $0x2d8] sm:$0xff]
    %v749 = vld [vmem:[#allocation8 + $0x2e0] sm:$0xff]
    %v750 = vld [vmem:[#allocation8 + $0x2e8] sm:$0xff]
    %v751 = vld [vmem:[#allocation8 + $0x2f0] sm:$0xff]
    %v752 = vld [vmem:[#allocation8 + $0x2f8] sm:$0xff]
    %v753 = vld [vmem:[#allocation8 + $0x300] sm:$0xff]
    %v754 = vld [vmem:[#allocation8 + $0x308] sm:$0xff]
    %v755 = vld [vmem:[#allocation8 + $0x310] sm:$0xff]
    %v756 = vld [vmem:[#allocation8 + $0x318] sm:$0xff]
    %v757 = vld [vmem:[#allocation8 + $0x320] sm:$0xff]
    %v758 = vld [vmem:[#allocation8 + $0x328] sm:$0xff]
    %v759 = vld [vmem:[#allocation8 + $0x330] sm:$0xff]
    %v760 = vld [vmem:[#allocation8 + $0x338] sm:$0xff]
    %v761 = vld [vmem:[#allocation8 + $0x340] sm:$0xff]
    %v762 = vld [vmem:[#allocation8 + $0x348] sm:$0xff]
    %v763 = vld [vmem:[#allocation8 + $0x350] sm:$0xff]
    %v764 = vld [vmem:[#allocation8 + $0x358] sm:$0xff]
    %v765 = vld [vmem:[#allocation8 + $0x360] sm:$0xff]
    %v766 = vld [vmem:[#allocation8 + $0x368] sm:$0xff]
    %v767 = vld [vmem:[#allocation8 + $0x370] sm:$0xff]
    %v768 = vld [vmem:[#allocation8 + $0x378] sm:$0xff]
    %v769 = vld [vmem:[#allocation8 + $0x380] sm:$0xff]
    %v770 = vld [vmem:[#allocation8 + $0x388] sm:$0xff]
    %v771 = vld [vmem:[#allocation8 + $0x390] sm:$0xff]
    %v772 = vld [vmem:[#allocation8 + $0x398] sm:$0xff]
    %v773 = vld [vmem:[#allocation8 + $0x3a0] sm:$0xff]
    %v774 = vld [vmem:[#allocation8 + $0x3a8] sm:$0xff]
    %v775 = vld [vmem:[#allocation8 + $0x3b0] sm:$0xff]
    %v776 = vld [vmem:[#allocation8 + $0x3b8] sm:$0xff]
    %v777 = vld [vmem:[#allocation8 + $0x3c0] sm:$0xff]
    %v778 = vld [vmem:[#allocation8 + $0x3c8] sm:$0xff]
    %v779 = vld [vmem:[#allocation8 + $0x3d0] sm:$0xff]
    %v780 = vld [vmem:[#allocation8 + $0x3d8] sm:$0xff]
    %v781 = vld [vmem:[#allocation8 + $0x3e0] sm:$0xff]
    %v782 = vld [vmem:[#allocation8 + $0x3e8] sm:$0xff]
    %v783 = vld [vmem:[#allocation8 + $0x3f0] sm:$0xff]
    %v784 = vld [vmem:[#allocation8 + $0x3f8] sm:$0xff]
    %v785 = vrot.slane %v649, 1
    %v786 = vrot.slane %v650, 1
    %v787 = vrot.slane %v651, 1
    %v788 = vrot.slane %v652, 1
    %v789 = vrot.slane %v653, 1
    %v790 = vrot.slane %v654, 1
    %v791 = vrot.slane %v655, 1
    %v792 = vrot.slane %v656, 1
    %v793 = vsel %vm263, %v785, %v789
    %v794 = vsel %vm263, %v786, %v790
    %v795 = vsel %vm263, %v787, %v791
    %v796 = vsel %vm263, %v788, %v792
    %v797 = vsel %vm263, %v789, %v785
    %v798 = vsel %vm263, %v790, %v786
    %v799 = vsel %vm263, %v791, %v787
    %v800 = vsel %vm263, %v792, %v788
    %v801 = vld [vmem:[#allocation10] sm:$0xff]
    %v802 = vld [vmem:[#allocation10 + $0x8] sm:$0xff]
    %v803 = vld [vmem:[#allocation10 + $0x10] sm:$0xff]
    %v804 = vld [vmem:[#allocation10 + $0x18] sm:$0xff]
    %v805 = vld [vmem:[#allocation10 + $0x20] sm:$0xff]
    %v806 = vld [vmem:[#allocation10 + $0x28] sm:$0xff]
    %v807 = vld [vmem:[#allocation10 + $0x30] sm:$0xff]
    %v808 = vld [vmem:[#allocation10 + $0x38] sm:$0xff]
    %v809 = vld [vmem:[#allocation10 + $0x40] sm:$0xff]
    %v810 = vld [vmem:[#allocation10 + $0x48] sm:$0xff]
    %v811 = vld [vmem:[#allocation10 + $0x50] sm:$0xff]
    %v812 = vld [vmem:[#allocation10 + $0x58] sm:$0xff]
    %v813 = vld [vmem:[#allocation10 + $0x60] sm:$0xff]
    %v814 = vld [vmem:[#allocation10 + $0x68] sm:$0xff]
    %v815 = vld [vmem:[#allocation10 + $0x70] sm:$0xff]
    %v816 = vld [vmem:[#allocation10 + $0x78] sm:$0xff]
    %v817 = vld [vmem:[#allocation10 + $0x80] sm:$0xff]
    %v818 = vld [vmem:[#allocation10 + $0x88] sm:$0xff]
    %v819 = vld [vmem:[#allocation10 + $0x90] sm:$0xff]
    %v820 = vld [vmem:[#allocation10 + $0x98] sm:$0xff]
    %v821 = vld [vmem:[#allocation10 + $0xa0] sm:$0xff]
    %v822 = vld [vmem:[#allocation10 + $0xa8] sm:$0xff]
    %v823 = vld [vmem:[#allocation10 + $0xb0] sm:$0xff]
    %v824 = vld [vmem:[#allocation10 + $0xb8] sm:$0xff]
    %v825 = vld [vmem:[#allocation10 + $0xc0] sm:$0xff]
    %v826 = vld [vmem:[#allocation10 + $0xc8] sm:$0xff]
    %v827 = vld [vmem:[#allocation10 + $0xd0] sm:$0xff]
    %v828 = vld [vmem:[#allocation10 + $0xd8] sm:$0xff]
    %v829 = vld [vmem:[#allocation10 + $0xe0] sm:$0xff]
    %v830 = vld [vmem:[#allocation10 + $0xe8] sm:$0xff]
    %v831 = vld [vmem:[#allocation10 + $0xf0] sm:$0xff]
    %v832 = vld [vmem:[#allocation10 + $0xf8] sm:$0xff]
    %v833 = vld [vmem:[#allocation10 + $0x100] sm:$0xff]
    %v834 = vld [vmem:[#allocation10 + $0x108] sm:$0xff]
    %v835 = vld [vmem:[#allocation10 + $0x110] sm:$0xff]
    %v836 = vld [vmem:[#allocation10 + $0x118] sm:$0xff]
    %v837 = vld [vmem:[#allocation10 + $0x120] sm:$0xff]
    %v838 = vld [vmem:[#allocation10 + $0x128] sm:$0xff]
    %v839 = vld [vmem:[#allocation10 + $0x130] sm:$0xff]
    %v840 = vld [vmem:[#allocation10 + $0x138] sm:$0xff]
    %v841 = vld [vmem:[#allocation10 + $0x140] sm:$0xff]
    %v842 = vld [vmem:[#allocation10 + $0x148] sm:$0xff]
    %v843 = vld [vmem:[#allocation10 + $0x150] sm:$0xff]
    %v844 = vld [vmem:[#allocation10 + $0x158] sm:$0xff]
    %v845 = vld [vmem:[#allocation10 + $0x160] sm:$0xff]
    %v846 = vld [vmem:[#allocation10 + $0x168] sm:$0xff]
    %v847 = vld [vmem:[#allocation10 + $0x170] sm:$0xff]
    %v848 = vld [vmem:[#allocation10 + $0x178] sm:$0xff]
    %v849 = vld [vmem:[#allocation10 + $0x180] sm:$0xff]
    %v850 = vld [vmem:[#allocation10 + $0x188] sm:$0xff]
    %v851 = vld [vmem:[#allocation10 + $0x190] sm:$0xff]
    %v852 = vld [vmem:[#allocation10 + $0x198] sm:$0xff]
    %v853 = vld [vmem:[#allocation10 + $0x1a0] sm:$0xff]
    %v854 = vld [vmem:[#allocation10 + $0x1a8] sm:$0xff]
    %v855 = vld [vmem:[#allocation10 + $0x1b0] sm:$0xff]
    %v856 = vld [vmem:[#allocation10 + $0x1b8] sm:$0xff]
    %v857 = vld [vmem:[#allocation10 + $0x1c0] sm:$0xff]
    %v858 = vld [vmem:[#allocation10 + $0x1c8] sm:$0xff]
    %v859 = vld [vmem:[#allocation10 + $0x1d0] sm:$0xff]
    %v860 = vld [vmem:[#allocation10 + $0x1d8] sm:$0xff]
    %v861 = vld [vmem:[#allocation10 + $0x1e0] sm:$0xff]
    %v862 = vld [vmem:[#allocation10 + $0x1e8] sm:$0xff]
    %v863 = vld [vmem:[#allocation10 + $0x1f0] sm:$0xff]
    %v864 = vld [vmem:[#allocation10 + $0x1f8] sm:$0xff]
    %v865 = vld [vmem:[#allocation10 + $0x200] sm:$0xff]
    %v866 = vld [vmem:[#allocation10 + $0x208] sm:$0xff]
    %v867 = vld [vmem:[#allocation10 + $0x210] sm:$0xff]
    %v868 = vld [vmem:[#allocation10 + $0x218] sm:$0xff]
    %v869 = vld [vmem:[#allocation10 + $0x220] sm:$0xff]
    %v870 = vld [vmem:[#allocation10 + $0x228] sm:$0xff]
    %v871 = vld [vmem:[#allocation10 + $0x230] sm:$0xff]
    %v872 = vld [vmem:[#allocation10 + $0x238] sm:$0xff]
    %v873 = vld [vmem:[#allocation10 + $0x240] sm:$0xff]
    %v874 = vld [vmem:[#allocation10 + $0x248] sm:$0xff]
    %v875 = vld [vmem:[#allocation10 + $0x250] sm:$0xff]
    %v876 = vld [vmem:[#allocation10 + $0x258] sm:$0xff]
    %v877 = vld [vmem:[#allocation10 + $0x260] sm:$0xff]
    %v878 = vld [vmem:[#allocation10 + $0x268] sm:$0xff]
    %v879 = vld [vmem:[#allocation10 + $0x270] sm:$0xff]
    %v880 = vld [vmem:[#allocation10 + $0x278] sm:$0xff]
    %v881 = vld [vmem:[#allocation10 + $0x280] sm:$0xff]
    %v882 = vld [vmem:[#allocation10 + $0x288] sm:$0xff]
    %v883 = vld [vmem:[#allocation10 + $0x290] sm:$0xff]
    %v884 = vld [vmem:[#allocation10 + $0x298] sm:$0xff]
    %v885 = vld [vmem:[#allocation10 + $0x2a0] sm:$0xff]
    %v886 = vld [vmem:[#allocation10 + $0x2a8] sm:$0xff]
    %v887 = vld [vmem:[#allocation10 + $0x2b0] sm:$0xff]
    %v888 = vld [vmem:[#allocation10 + $0x2b8] sm:$0xff]
    %v889 = vld [vmem:[#allocation10 + $0x2c0] sm:$0xff]
    %v890 = vld [vmem:[#allocation10 + $0x2c8] sm:$0xff]
    %v891 = vld [vmem:[#allocation10 + $0x2d0] sm:$0xff]
    %v892 = vld [vmem:[#allocation10 + $0x2d8] sm:$0xff]
    %v893 = vld [vmem:[#allocation10 + $0x2e0] sm:$0xff]
    %v894 = vld [vmem:[#allocation10 + $0x2e8] sm:$0xff]
    %v895 = vld [vmem:[#allocation10 + $0x2f0] sm:$0xff]
    %v896 = vld [vmem:[#allocation10 + $0x2f8] sm:$0xff]
    %v897 = vld [vmem:[#allocation10 + $0x300] sm:$0xff]
    %v898 = vld [vmem:[#allocation10 + $0x308] sm:$0xff]
    %v899 = vld [vmem:[#allocation10 + $0x310] sm:$0xff]
    %v900 = vld [vmem:[#allocation10 + $0x318] sm:$0xff]
    %v901 = vld [vmem:[#allocation10 + $0x320] sm:$0xff]
    %v902 = vld [vmem:[#allocation10 + $0x328] sm:$0xff]
    %v903 = vld [vmem:[#allocation10 + $0x330] sm:$0xff]
    %v904 = vld [vmem:[#allocation10 + $0x338] sm:$0xff]
    %v905 = vld [vmem:[#allocation10 + $0x340] sm:$0xff]
    %v906 = vld [vmem:[#allocation10 + $0x348] sm:$0xff]
    %v907 = vld [vmem:[#allocation10 + $0x350] sm:$0xff]
    %v908 = vld [vmem:[#allocation10 + $0x358] sm:$0xff]
    %v909 = vld [vmem:[#allocation10 + $0x360] sm:$0xff]
    %v910 = vld [vmem:[#allocation10 + $0x368] sm:$0xff]
    %v911 = vld [vmem:[#allocation10 + $0x370] sm:$0xff]
    %v912 = vld [vmem:[#allocation10 + $0x378] sm:$0xff]
    %v913 = vld [vmem:[#allocation10 + $0x380] sm:$0xff]
    %v914 = vld [vmem:[#allocation10 + $0x388] sm:$0xff]
    %v915 = vld [vmem:[#allocation10 + $0x390] sm:$0xff]
    %v916 = vld [vmem:[#allocation10 + $0x398] sm:$0xff]
    %v917 = vld [vmem:[#allocation10 + $0x3a0] sm:$0xff]
    %v918 = vld [vmem:[#allocation10 + $0x3a8] sm:$0xff]
    %v919 = vld [vmem:[#allocation10 + $0x3b0] sm:$0xff]
    %v920 = vld [vmem:[#allocation10 + $0x3b8] sm:$0xff]
    %v921 = vld [vmem:[#allocation10 + $0x3c0] sm:$0xff]
    %v922 = vld [vmem:[#allocation10 + $0x3c8] sm:$0xff]
    %v923 = vld [vmem:[#allocation10 + $0x3d0] sm:$0xff]
    %v924 = vld [vmem:[#allocation10 + $0x3d8] sm:$0xff]
    %v925 = vld [vmem:[#allocation10 + $0x3e0] sm:$0xff]
    %v926 = vld [vmem:[#allocation10 + $0x3e8] sm:$0xff]
    %v927 = vld [vmem:[#allocation10 + $0x3f0] sm:$0xff]
    %v928 = vld [vmem:[#allocation10 + $0x3f8] sm:$0xff]
    %929 = vmatprep.subr.mxu0 %v832
    %930 = vmatpush1.msra.mxu0 %v831
    %931 = vmatprep.subr.mxu0 %v830
    %932 = vmatpush1.msra.mxu0 %v829
    %933 = vmatprep.subr.mxu0 %v828
    %934 = vmatpush1.msra.mxu0 %v827
    %935 = vmatprep.subr.mxu0 %v826
    %936 = vmatpush1.msra.mxu0 %v825
    %937 = vmatprep.subr.mxu0 %v824
    %938 = vmatpush1.msra.mxu0 %v823
    %939 = vmatprep.subr.mxu0 %v822
    %940 = vmatpush1.msra.mxu0 %v821
    %941 = vmatprep.subr.mxu0 %v820
    %942 = vmatpush1.msra.mxu0 %v819
    %943 = vmatprep.subr.mxu0 %v818
    %944 = vmatpush1.msra.mxu0 %v817
    %945 = vmatprep.subr.mxu0 %v816
    %946 = vmatpush1.msra.mxu0 %v815
    %947 = vmatprep.subr.mxu0 %v814
    %948 = vmatpush1.msra.mxu0 %v813
    %949 = vmatprep.subr.mxu0 %v812
    %950 = vmatpush1.msra.mxu0 %v811
    %951 = vmatprep.subr.mxu0 %v810
    %952 = vmatpush1.msra.mxu0 %v809
    %953 = vmatprep.subr.mxu0 %v808
    %954 = vmatpush1.msra.mxu0 %v807
    %955 = vmatprep.subr.mxu0 %v806
    %956 = vmatpush1.msra.mxu0 %v805
    %957 = vmatprep.subr.mxu0 %v804
    %958 = vmatpush1.msra.mxu0 %v803
    %959 = vmatprep.subr.mxu0 %v802
    %960 = vmatpush1.msra.mxu0 %v801
    %961 = vmatprep.subr.mxu0 %v864
    %962 = vmatpush2.msra.mxu0 %v863
    %963 = vmatprep.subr.mxu0 %v862
    %964 = vmatpush2.msra.mxu0 %v861
    %965 = vmatprep.subr.mxu0 %v860
    %966 = vmatpush2.msra.mxu0 %v859
    %967 = vmatprep.subr.mxu0 %v858
    %968 = vmatpush2.msra.mxu0 %v857
    %969 = vmatprep.subr.mxu0 %v856
    %970 = vmatpush2.msra.mxu0 %v855
    %971 = vmatprep.subr.mxu0 %v854
    %972 = vmatpush2.msra.mxu0 %v853
    %973 = vmatprep.subr.mxu0 %v852
    %974 = vmatpush2.msra.mxu0 %v851
    %975 = vmatprep.subr.mxu0 %v850
    %976 = vmatpush2.msra.mxu0 %v849
    %977 = vmatprep.subr.mxu0 %v848
    %978 = vmatpush2.msra.mxu0 %v847
    %979 = vmatprep.subr.mxu0 %v846
    %980 = vmatpush2.msra.mxu0 %v845
    %981 = vmatprep.subr.mxu0 %v844
    %982 = vmatpush2.msra.mxu0 %v843
    %983 = vmatprep.subr.mxu0 %v842
    %984 = vmatpush2.msra.mxu0 %v841
    %985 = vmatprep.subr.mxu0 %v840
    %986 = vmatpush2.msra.mxu0 %v839
    %987 = vmatprep.subr.mxu0 %v838
    %988 = vmatpush2.msra.mxu0 %v837
    %989 = vmatprep.subr.mxu0 %v836
    %990 = vmatpush2.msra.mxu0 %v835
    %991 = vmatprep.subr.mxu0 %v834
    %992 = vmatpush2.msra.mxu0 %v833
    %993 = vmatprep.mubr.f32.mxu0 %v794
    %994 = vmatmul.mubr.f32.gmra.mxu0 %v793
    %v995 = vpop.f32.mrf.mxu0
    %v996 = vadd.f32 0.0, %v995
    %v997 = vpop.f32.mrf.mxu0
    %v998 = vadd.f32 0.0, %v997
    %999 = vmatprep.mubr.f32.mxu0 %v798
    %1000 = vmatmul.mubr.f32.gmra.mxu0 %v797
    %v1001 = vpop.f32.mrf.mxu0
    %v1002 = vadd.f32 0.0, %v1001
    %v1003 = vpop.f32.mrf.mxu0
    %v1004 = vadd.f32 0.0, %v1003
    %1005 = vdwg.mxu0
    %1006 = vmatprep.subr.mxu0 %v896
    %1007 = vmatpush1.msra.mxu0 %v895
    %1008 = vmatprep.subr.mxu0 %v894
    %1009 = vmatpush1.msra.mxu0 %v893
    %1010 = vmatprep.subr.mxu0 %v892
    %1011 = vmatpush1.msra.mxu0 %v891
    %1012 = vmatprep.subr.mxu0 %v890
    %1013 = vmatpush1.msra.mxu0 %v889
    %1014 = vmatprep.subr.mxu0 %v888
    %1015 = vmatpush1.msra.mxu0 %v887
    %1016 = vmatprep.subr.mxu0 %v886
    %1017 = vmatpush1.msra.mxu0 %v885
    %1018 = vmatprep.subr.mxu0 %v884
    %1019 = vmatpush1.msra.mxu0 %v883
    %1020 = vmatprep.subr.mxu0 %v882
    %1021 = vmatpush1.msra.mxu0 %v881
    %1022 = vmatprep.subr.mxu0 %v880
    %1023 = vmatpush1.msra.mxu0 %v879
    %1024 = vmatprep.subr.mxu0 %v878
    %1025 = vmatpush1.msra.mxu0 %v877
    %1026 = vmatprep.subr.mxu0 %v876
    %1027 = vmatpush1.msra.mxu0 %v875
    %1028 = vmatprep.subr.mxu0 %v874
    %1029 = vmatpush1.msra.mxu0 %v873
    %1030 = vmatprep.subr.mxu0 %v872
    %1031 = vmatpush1.msra.mxu0 %v871
    %1032 = vmatprep.subr.mxu0 %v870
    %1033 = vmatpush1.msra.mxu0 %v869
    %1034 = vmatprep.subr.mxu0 %v868
    %1035 = vmatpush1.msra.mxu0 %v867
    %1036 = vmatprep.subr.mxu0 %v866
    %1037 = vmatpush1.msra.mxu0 %v865
    %1038 = vmatprep.subr.mxu0 %v928
    %1039 = vmatpush2.msra.mxu0 %v927
    %1040 = vmatprep.subr.mxu0 %v926
    %1041 = vmatpush2.msra.mxu0 %v925
    %1042 = vmatprep.subr.mxu0 %v924
    %1043 = vmatpush2.msra.mxu0 %v923
    %1044 = vmatprep.subr.mxu0 %v922
    %1045 = vmatpush2.msra.mxu0 %v921
    %1046 = vmatprep.subr.mxu0 %v920
    %1047 = vmatpush2.msra.mxu0 %v919
    %1048 = vmatprep.subr.mxu0 %v918
    %1049 = vmatpush2.msra.mxu0 %v917
    %1050 = vmatprep.subr.mxu0 %v916
    %1051 = vmatpush2.msra.mxu0 %v915
    %1052 = vmatprep.subr.mxu0 %v914
    %1053 = vmatpush2.msra.mxu0 %v913
    %1054 = vmatprep.subr.mxu0 %v912
    %1055 = vmatpush2.msra.mxu0 %v911
    %1056 = vmatprep.subr.mxu0 %v910
    %1057 = vmatpush2.msra.mxu0 %v909
    %1058 = vmatprep.subr.mxu0 %v908
    %1059 = vmatpush2.msra.mxu0 %v907
    %1060 = vmatprep.subr.mxu0 %v906
    %1061 = vmatpush2.msra.mxu0 %v905
    %1062 = vmatprep.subr.mxu0 %v904
    %1063 = vmatpush2.msra.mxu0 %v903
    %1064 = vmatprep.subr.mxu0 %v902
    %1065 = vmatpush2.msra.mxu0 %v901
    %1066 = vmatprep.subr.mxu0 %v900
    %1067 = vmatpush2.msra.mxu0 %v899
    %1068 = vmatprep.subr.mxu0 %v898
    %1069 = vmatpush2.msra.mxu0 %v897
    %1070 = vmatprep.mubr.f32.mxu0 %v796
    %1071 = vmatmul.mubr.f32.gmra.mxu0 %v795
    %v1072 = vpop.f32.mrf.mxu0
    %v1073 = vadd.f32 %v996, %v1072
    %v1074 = vpop.f32.mrf.mxu0
    %v1075 = vadd.f32 %v998, %v1074
    %1076 = vmatprep.mubr.f32.mxu0 %v800
    %1077 = vmatmul.mubr.f32.gmra.mxu0 %v799
    %v1078 = vpop.f32.mrf.mxu0
    %v1079 = vadd.f32 %v1002, %v1078
    %v1080 = vpop.f32.mrf.mxu0
    %v1081 = vadd.f32 %v1004, %v1080
    %1082 = vdwg.mxu0
    %1083 = vmatprep.subr.mxu0 %v688
    %1084 = vmatpush1.msra.mxu0 %v687
    %1085 = vmatprep.subr.mxu0 %v686
    %1086 = vmatpush1.msra.mxu0 %v685
    %1087 = vmatprep.subr.mxu0 %v684
    %1088 = vmatpush1.msra.mxu0 %v683
    %1089 = vmatprep.subr.mxu0 %v682
    %1090 = vmatpush1.msra.mxu0 %v681
    %1091 = vmatprep.subr.mxu0 %v680
    %1092 = vmatpush1.msra.mxu0 %v679
    %1093 = vmatprep.subr.mxu0 %v678
    %1094 = vmatpush1.msra.mxu0 %v677
    %1095 = vmatprep.subr.mxu0 %v676
    %1096 = vmatpush1.msra.mxu0 %v675
    %1097 = vmatprep.subr.mxu0 %v674
    %1098 = vmatpush1.msra.mxu0 %v673
    %1099 = vmatprep.subr.mxu0 %v672
    %1100 = vmatpush1.msra.mxu0 %v671
    %1101 = vmatprep.subr.mxu0 %v670
    %1102 = vmatpush1.msra.mxu0 %v669
    %1103 = vmatprep.subr.mxu0 %v668
    %1104 = vmatpush1.msra.mxu0 %v667
    %1105 = vmatprep.subr.mxu0 %v666
    %1106 = vmatpush1.msra.mxu0 %v665
    %1107 = vmatprep.subr.mxu0 %v664
    %1108 = vmatpush1.msra.mxu0 %v663
    %1109 = vmatprep.subr.mxu0 %v662
    %1110 = vmatpush1.msra.mxu0 %v661
    %1111 = vmatprep.subr.mxu0 %v660
    %1112 = vmatpush1.msra.mxu0 %v659
    %1113 = vmatprep.subr.mxu0 %v658
    %1114 = vmatpush1.msra.mxu0 %v657
    %1115 = vmatprep.subr.mxu0 %v720
    %1116 = vmatpush2.msra.mxu0 %v719
    %1117 = vmatprep.subr.mxu0 %v718
    %1118 = vmatpush2.msra.mxu0 %v717
    %1119 = vmatprep.subr.mxu0 %v716
    %1120 = vmatpush2.msra.mxu0 %v715
    %1121 = vmatprep.subr.mxu0 %v714
    %1122 = vmatpush2.msra.mxu0 %v713
    %1123 = vmatprep.subr.mxu0 %v712
    %1124 = vmatpush2.msra.mxu0 %v711
    %1125 = vmatprep.subr.mxu0 %v710
    %1126 = vmatpush2.msra.mxu0 %v709
    %1127 = vmatprep.subr.mxu0 %v708
    %1128 = vmatpush2.msra.mxu0 %v707
    %1129 = vmatprep.subr.mxu0 %v706
    %1130 = vmatpush2.msra.mxu0 %v705
    %1131 = vmatprep.subr.mxu0 %v704
    %1132 = vmatpush2.msra.mxu0 %v703
    %1133 = vmatprep.subr.mxu0 %v702
    %1134 = vmatpush2.msra.mxu0 %v701
    %1135 = vmatprep.subr.mxu0 %v700
    %1136 = vmatpush2.msra.mxu0 %v699
    %1137 = vmatprep.subr.mxu0 %v698
    %1138 = vmatpush2.msra.mxu0 %v697
    %1139 = vmatprep.subr.mxu0 %v696
    %1140 = vmatpush2.msra.mxu0 %v695
    %1141 = vmatprep.subr.mxu0 %v694
    %1142 = vmatpush2.msra.mxu0 %v693
    %1143 = vmatprep.subr.mxu0 %v692
    %1144 = vmatpush2.msra.mxu0 %v691
    %1145 = vmatprep.subr.mxu0 %v690
    %1146 = vmatpush2.msra.mxu0 %v689
    %1147 = vmatprep.mubr.f32.mxu0 %v650
    %1148 = vmatmul.mubr.f32.gmra.mxu0 %v649
    %v1149 = vpop.f32.mrf.mxu0
    %v1150 = vadd.f32 %v1073, %v1149
    %v1151 = vpop.f32.mrf.mxu0
    %v1152 = vadd.f32 %v1075, %v1151
    %1153 = vmatprep.mubr.f32.mxu0 %v654
    %1154 = vmatmul.mubr.f32.gmra.mxu0 %v653
    %v1155 = vpop.f32.mrf.mxu0
    %v1156 = vadd.f32 %v1079, %v1155
    %v1157 = vpop.f32.mrf.mxu0
    %v1158 = vadd.f32 %v1081, %v1157
    %1159 = vdwg.mxu0
    %1160 = vmatprep.subr.mxu0 %v752
    %1161 = vmatpush1.msra.mxu0 %v751
    %1162 = vmatprep.subr.mxu0 %v750
    %1163 = vmatpush1.msra.mxu0 %v749
    %1164 = vmatprep.subr.mxu0 %v748
    %1165 = vmatpush1.msra.mxu0 %v747
    %1166 = vmatprep.subr.mxu0 %v746
    %1167 = vmatpush1.msra.mxu0 %v745
    %1168 = vmatprep.subr.mxu0 %v744
    %1169 = vmatpush1.msra.mxu0 %v743
    %1170 = vmatprep.subr.mxu0 %v742
    %1171 = vmatpush1.msra.mxu0 %v741
    %1172 = vmatprep.subr.mxu0 %v740
    %1173 = vmatpush1.msra.mxu0 %v739
    %1174 = vmatprep.subr.mxu0 %v738
    %1175 = vmatpush1.msra.mxu0 %v737
    %1176 = vmatprep.subr.mxu0 %v736
    %1177 = vmatpush1.msra.mxu0 %v735
    %1178 = vmatprep.subr.mxu0 %v734
    %1179 = vmatpush1.msra.mxu0 %v733
    %1180 = vmatprep.subr.mxu0 %v732
    %1181 = vmatpush1.msra.mxu0 %v731
    %1182 = vmatprep.subr.mxu0 %v730
    %1183 = vmatpush1.msra.mxu0 %v729
    %1184 = vmatprep.subr.mxu0 %v728
    %1185 = vmatpush1.msra.mxu0 %v727
    %1186 = vmatprep.subr.mxu0 %v726
    %1187 = vmatpush1.msra.mxu0 %v725
    %1188 = vmatprep.subr.mxu0 %v724
    %1189 = vmatpush1.msra.mxu0 %v723
    %1190 = vmatprep.subr.mxu0 %v722
    %1191 = vmatpush1.msra.mxu0 %v721
    %1192 = vmatprep.subr.mxu0 %v784
    %1193 = vmatpush2.msra.mxu0 %v783
    %1194 = vmatprep.subr.mxu0 %v782
    %1195 = vmatpush2.msra.mxu0 %v781
    %1196 = vmatprep.subr.mxu0 %v780
    %1197 = vmatpush2.msra.mxu0 %v779
    %1198 = vmatprep.subr.mxu0 %v778
    %1199 = vmatpush2.msra.mxu0 %v777
    %1200 = vmatprep.subr.mxu0 %v776
    %1201 = vmatpush2.msra.mxu0 %v775
    %1202 = vmatprep.subr.mxu0 %v774
    %1203 = vmatpush2.msra.mxu0 %v773
    %1204 = vmatprep.subr.mxu0 %v772
    %1205 = vmatpush2.msra.mxu0 %v771
    %1206 = vmatprep.subr.mxu0 %v770
    %1207 = vmatpush2.msra.mxu0 %v769
    %1208 = vmatprep.subr.mxu0 %v768
    %1209 = vmatpush2.msra.mxu0 %v767
    %1210 = vmatprep.subr.mxu0 %v766
    %1211 = vmatpush2.msra.mxu0 %v765
    %1212 = vmatprep.subr.mxu0 %v764
    %1213 = vmatpush2.msra.mxu0 %v763
    %1214 = vmatprep.subr.mxu0 %v762
    %1215 = vmatpush2.msra.mxu0 %v761
    %1216 = vmatprep.subr.mxu0 %v760
    %1217 = vmatpush2.msra.mxu0 %v759
    %1218 = vmatprep.subr.mxu0 %v758
    %1219 = vmatpush2.msra.mxu0 %v757
    %1220 = vmatprep.subr.mxu0 %v756
    %1221 = vmatpush2.msra.mxu0 %v755
    %1222 = vmatprep.subr.mxu0 %v754
    %1223 = vmatpush2.msra.mxu0 %v753
    %1224 = vmatprep.mubr.f32.mxu0 %v652
    %1225 = vmatmul.mubr.f32.gmra.mxu0 %v651
    %v1226 = vpop.f32.mrf.mxu0
    %v1227 = vadd.f32 %v1150, %v1226
    %v1228 = vpop.f32.mrf.mxu0
    %v1229 = vadd.f32 %v1152, %v1228
    %1230 = vmatprep.mubr.f32.mxu0 %v656
    %1231 = vmatmul.mubr.f32.gmra.mxu0 %v655
    %v1232 = vpop.f32.mrf.mxu0
    %v1233 = vadd.f32 %v1156, %v1232
    %v1234 = vpop.f32.mrf.mxu0
    %v1235 = vadd.f32 %v1158, %v1234
    %1236 = vdwg.mxu0
    %v1237 = vld [vmem:[#allocation11] sm:$0x3]
    %v1239 = vlaneseq
    %v1240 = vshrl.u32 %v1239, 7
    %v1241 = vsub.s32 0, %v1240
    %v1242 = vrot.slane %v1237, %v1241
    %v1243 = vlaneseq
    %v1244 = vshrl.u32 %v1243, 7
    %v1245 = vsub.s32 1, %v1244
    %v1246 = vrot.slane %v1237, %v1245
    %v1249 = vadd.f32 %v1227, %v1242
    %v1250 = vadd.f32 %v1229, %v1246
    %v1251 = vadd.f32 %v1233, %v1242
    %v1252 = vadd.f32 %v1235, %v1246
    %v1253 = vmax.f32 %v1249, 0.0
    %v1254 = vmax.f32 %v1250, 0.0
    %v1255 = vmax.f32 %v1251, 0.0
    %v1256 = vmax.f32 %v1252, 0.0
    %v1257 = vld [vmem:[#allocation13] sm:$0xff]
    %v1258 = vld [vmem:[#allocation13 + $0x8] sm:$0xff]
    %v1259 = vld [vmem:[#allocation13 + $0x10] sm:$0xff]
    %v1260 = vld [vmem:[#allocation13 + $0x18] sm:$0xff]
    %v1261 = vld [vmem:[#allocation13 + $0x20] sm:$0xff]
    %v1262 = vld [vmem:[#allocation13 + $0x28] sm:$0xff]
    %v1263 = vld [vmem:[#allocation13 + $0x30] sm:$0xff]
    %v1264 = vld [vmem:[#allocation13 + $0x38] sm:$0xff]
    %v1265 = vld [vmem:[#allocation13 + $0x40] sm:$0xff]
    %v1266 = vld [vmem:[#allocation13 + $0x48] sm:$0xff]
    %v1267 = vld [vmem:[#allocation13 + $0x50] sm:$0xff]
    %v1268 = vld [vmem:[#allocation13 + $0x58] sm:$0xff]
    %v1269 = vld [vmem:[#allocation13 + $0x60] sm:$0xff]
    %v1270 = vld [vmem:[#allocation13 + $0x68] sm:$0xff]
    %v1271 = vld [vmem:[#allocation13 + $0x70] sm:$0xff]
    %v1272 = vld [vmem:[#allocation13 + $0x78] sm:$0xff]
    %v1273 = vld [vmem:[#allocation13 + $0x80] sm:$0xff]
    %v1274 = vld [vmem:[#allocation13 + $0x88] sm:$0xff]
    %v1275 = vld [vmem:[#allocation13 + $0x90] sm:$0xff]
    %v1276 = vld [vmem:[#allocation13 + $0x98] sm:$0xff]
    %v1277 = vld [vmem:[#allocation13 + $0xa0] sm:$0xff]
    %v1278 = vld [vmem:[#allocation13 + $0xa8] sm:$0xff]
    %v1279 = vld [vmem:[#allocation13 + $0xb0] sm:$0xff]
    %v1280 = vld [vmem:[#allocation13 + $0xb8] sm:$0xff]
    %v1281 = vld [vmem:[#allocation13 + $0xc0] sm:$0xff]
    %v1282 = vld [vmem:[#allocation13 + $0xc8] sm:$0xff]
    %v1283 = vld [vmem:[#allocation13 + $0xd0] sm:$0xff]
    %v1284 = vld [vmem:[#allocation13 + $0xd8] sm:$0xff]
    %v1285 = vld [vmem:[#allocation13 + $0xe0] sm:$0xff]
    %v1286 = vld [vmem:[#allocation13 + $0xe8] sm:$0xff]
    %v1287 = vld [vmem:[#allocation13 + $0xf0] sm:$0xff]
    %v1288 = vld [vmem:[#allocation13 + $0xf8] sm:$0xff]
    %v1289 = vrot.slane %v1253, 1
    %v1290 = vrot.slane %v1254, 1
    %v1291 = vrot.slane %v1255, 1
    %v1292 = vrot.slane %v1256, 1
    %v1293 = vsel %vm263, %v1289, %v1291
    %v1294 = vsel %vm263, %v1290, %v1292
    %v1295 = vsel %vm263, %v1291, %v1289
    %v1296 = vsel %vm263, %v1292, %v1290
    %v1297 = vld [vmem:[#allocation14] sm:$0xff]
    %v1298 = vld [vmem:[#allocation14 + $0x8] sm:$0xff]
    %v1299 = vld [vmem:[#allocation14 + $0x10] sm:$0xff]
    %v1300 = vld [vmem:[#allocation14 + $0x18] sm:$0xff]
    %v1301 = vld [vmem:[#allocation14 + $0x20] sm:$0xff]
    %v1302 = vld [vmem:[#allocation14 + $0x28] sm:$0xff]
    %v1303 = vld [vmem:[#allocation14 + $0x30] sm:$0xff]
    %v1304 = vld [vmem:[#allocation14 + $0x38] sm:$0xff]
    %v1305 = vld [vmem:[#allocation14 + $0x40] sm:$0xff]
    %v1306 = vld [vmem:[#allocation14 + $0x48] sm:$0xff]
    %v1307 = vld [vmem:[#allocation14 + $0x50] sm:$0xff]
    %v1308 = vld [vmem:[#allocation14 + $0x58] sm:$0xff]
    %v1309 = vld [vmem:[#allocation14 + $0x60] sm:$0xff]
    %v1310 = vld [vmem:[#allocation14 + $0x68] sm:$0xff]
    %v1311 = vld [vmem:[#allocation14 + $0x70] sm:$0xff]
    %v1312 = vld [vmem:[#allocation14 + $0x78] sm:$0xff]
    %v1313 = vld [vmem:[#allocation14 + $0x80] sm:$0xff]
    %v1314 = vld [vmem:[#allocation14 + $0x88] sm:$0xff]
    %v1315 = vld [vmem:[#allocation14 + $0x90] sm:$0xff]
    %v1316 = vld [vmem:[#allocation14 + $0x98] sm:$0xff]
    %v1317 = vld [vmem:[#allocation14 + $0xa0] sm:$0xff]
    %v1318 = vld [vmem:[#allocation14 + $0xa8] sm:$0xff]
    %v1319 = vld [vmem:[#allocation14 + $0xb0] sm:$0xff]
    %v1320 = vld [vmem:[#allocation14 + $0xb8] sm:$0xff]
    %v1321 = vld [vmem:[#allocation14 + $0xc0] sm:$0xff]
    %v1322 = vld [vmem:[#allocation14 + $0xc8] sm:$0xff]
    %v1323 = vld [vmem:[#allocation14 + $0xd0] sm:$0xff]
    %v1324 = vld [vmem:[#allocation14 + $0xd8] sm:$0xff]
    %v1325 = vld [vmem:[#allocation14 + $0xe0] sm:$0xff]
    %v1326 = vld [vmem:[#allocation14 + $0xe8] sm:$0xff]
    %v1327 = vld [vmem:[#allocation14 + $0xf0] sm:$0xff]
    %v1328 = vld [vmem:[#allocation14 + $0xf8] sm:$0xff]
    %1329 = vmatprep.subr.mxu0 0.0
    %1330 = vmatpush1.msra.mxu0 %v1312
    %1331 = vmatprep.subr.mxu0 0.0
    %1332 = vmatpush1.msra.mxu0 %v1311
    %1333 = vmatprep.subr.mxu0 0.0
    %1334 = vmatpush1.msra.mxu0 %v1310
    %1335 = vmatprep.subr.mxu0 0.0
    %1336 = vmatpush1.msra.mxu0 %v1309
    %1337 = vmatprep.subr.mxu0 0.0
    %1338 = vmatpush1.msra.mxu0 %v1308
    %1339 = vmatprep.subr.mxu0 0.0
    %1340 = vmatpush1.msra.mxu0 %v1307
    %1341 = vmatprep.subr.mxu0 0.0
    %1342 = vmatpush1.msra.mxu0 %v1306
    %1343 = vmatprep.subr.mxu0 0.0
    %1344 = vmatpush1.msra.mxu0 %v1305
    %1345 = vmatprep.subr.mxu0 0.0
    %1346 = vmatpush1.msra.mxu0 %v1304
    %1347 = vmatprep.subr.mxu0 0.0
    %1348 = vmatpush1.msra.mxu0 %v1303
    %1349 = vmatprep.subr.mxu0 0.0
    %1350 = vmatpush1.msra.mxu0 %v1302
    %1351 = vmatprep.subr.mxu0 0.0
    %1352 = vmatpush1.msra.mxu0 %v1301
    %1353 = vmatprep.subr.mxu0 0.0
    %1354 = vmatpush1.msra.mxu0 %v1300
    %1355 = vmatprep.subr.mxu0 0.0
    %1356 = vmatpush1.msra.mxu0 %v1299
    %1357 = vmatprep.subr.mxu0 0.0
    %1358 = vmatpush1.msra.mxu0 %v1298
    %1359 = vmatprep.subr.mxu0 0.0
    %1360 = vmatpush1.msra.mxu0 %v1297
    %1361 = vmatprep.subr.mxu0 0.0
    %1362 = vmatpush2.msra.mxu0 %v1328
    %1363 = vmatprep.subr.mxu0 0.0
    %1364 = vmatpush2.msra.mxu0 %v1327
    %1365 = vmatprep.subr.mxu0 0.0
    %1366 = vmatpush2.msra.mxu0 %v1326
    %1367 = vmatprep.subr.mxu0 0.0
    %1368 = vmatpush2.msra.mxu0 %v1325
    %1369 = vmatprep.subr.mxu0 0.0
    %1370 = vmatpush2.msra.mxu0 %v1324
    %1371 = vmatprep.subr.mxu0 0.0
    %1372 = vmatpush2.msra.mxu0 %v1323
    %1373 = vmatprep.subr.mxu0 0.0
    %1374 = vmatpush2.msra.mxu0 %v1322
    %1375 = vmatprep.subr.mxu0 0.0
    %1376 = vmatpush2.msra.mxu0 %v1321
    %1377 = vmatprep.subr.mxu0 0.0
    %1378 = vmatpush2.msra.mxu0 %v1320
    %1379 = vmatprep.subr.mxu0 0.0
    %1380 = vmatpush2.msra.mxu0 %v1319
    %1381 = vmatprep.subr.mxu0 0.0
    %1382 = vmatpush2.msra.mxu0 %v1318
    %1383 = vmatprep.subr.mxu0 0.0
    %1384 = vmatpush2.msra.mxu0 %v1317
    %1385 = vmatprep.subr.mxu0 0.0
    %1386 = vmatpush2.msra.mxu0 %v1316
    %1387 = vmatprep.subr.mxu0 0.0
    %1388 = vmatpush2.msra.mxu0 %v1315
    %1389 = vmatprep.subr.mxu0 0.0
    %1390 = vmatpush2.msra.mxu0 %v1314
    %1391 = vmatprep.subr.mxu0 0.0
    %1392 = vmatpush2.msra.mxu0 %v1313
    %1393 = vmatprep.mubr.f32.mxu0 %v1294
    %1394 = vmatmul.mubr.f32.gmra.mxu0 %v1293
    %v1395 = vpop.f32.mrf.mxu0
    %v1396 = vadd.f32 0.0, %v1395
    %v1397 = vpop.f32.mrf.mxu0
    %1398 = vmatprep.mubr.f32.mxu0 %v1296
    %1399 = vmatmul.mubr.f32.gmra.mxu0 %v1295
    %v1400 = vpop.f32.mrf.mxu0
    %v1401 = vadd.f32 0.0, %v1400
    %v1402 = vpop.f32.mrf.mxu0
    %1403 = vdwg.mxu0
    %1404 = vmatprep.subr.mxu0 0.0
    %1405 = vmatpush1.msra.mxu0 %v1272
    %1406 = vmatprep.subr.mxu0 0.0
    %1407 = vmatpush1.msra.mxu0 %v1271
    %1408 = vmatprep.subr.mxu0 0.0
    %1409 = vmatpush1.msra.mxu0 %v1270
    %1410 = vmatprep.subr.mxu0 0.0
    %1411 = vmatpush1.msra.mxu0 %v1269
    %1412 = vmatprep.subr.mxu0 0.0
    %1413 = vmatpush1.msra.mxu0 %v1268
    %1414 = vmatprep.subr.mxu0 0.0
    %1415 = vmatpush1.msra.mxu0 %v1267
    %1416 = vmatprep.subr.mxu0 0.0
    %1417 = vmatpush1.msra.mxu0 %v1266
    %1418 = vmatprep.subr.mxu0 0.0
    %1419 = vmatpush1.msra.mxu0 %v1265
    %1420 = vmatprep.subr.mxu0 0.0
    %1421 = vmatpush1.msra.mxu0 %v1264
    %1422 = vmatprep.subr.mxu0 0.0
    %1423 = vmatpush1.msra.mxu0 %v1263
    %1424 = vmatprep.subr.mxu0 0.0
    %1425 = vmatpush1.msra.mxu0 %v1262
    %1426 = vmatprep.subr.mxu0 0.0
    %1427 = vmatpush1.msra.mxu0 %v1261
    %1428 = vmatprep.subr.mxu0 0.0
    %1429 = vmatpush1.msra.mxu0 %v1260
    %1430 = vmatprep.subr.mxu0 0.0
    %1431 = vmatpush1.msra.mxu0 %v1259
    %1432 = vmatprep.subr.mxu0 0.0
    %1433 = vmatpush1.msra.mxu0 %v1258
    %1434 = vmatprep.subr.mxu0 0.0
    %1435 = vmatpush1.msra.mxu0 %v1257
    %1436 = vmatprep.subr.mxu0 0.0
    %1437 = vmatpush2.msra.mxu0 %v1288
    %1438 = vmatprep.subr.mxu0 0.0
    %1439 = vmatpush2.msra.mxu0 %v1287
    %1440 = vmatprep.subr.mxu0 0.0
    %1441 = vmatpush2.msra.mxu0 %v1286
    %1442 = vmatprep.subr.mxu0 0.0
    %1443 = vmatpush2.msra.mxu0 %v1285
    %1444 = vmatprep.subr.mxu0 0.0
    %1445 = vmatpush2.msra.mxu0 %v1284
    %1446 = vmatprep.subr.mxu0 0.0
    %1447 = vmatpush2.msra.mxu0 %v1283
    %1448 = vmatprep.subr.mxu0 0.0
    %1449 = vmatpush2.msra.mxu0 %v1282
    %1450 = vmatprep.subr.mxu0 0.0
    %1451 = vmatpush2.msra.mxu0 %v1281
    %1452 = vmatprep.subr.mxu0 0.0
    %1453 = vmatpush2.msra.mxu0 %v1280
    %1454 = vmatprep.subr.mxu0 0.0
    %1455 = vmatpush2.msra.mxu0 %v1279
    %1456 = vmatprep.subr.mxu0 0.0
    %1457 = vmatpush2.msra.mxu0 %v1278
    %1458 = vmatprep.subr.mxu0 0.0
    %1459 = vmatpush2.msra.mxu0 %v1277
    %1460 = vmatprep.subr.mxu0 0.0
    %1461 = vmatpush2.msra.mxu0 %v1276
    %1462 = vmatprep.subr.mxu0 0.0
    %1463 = vmatpush2.msra.mxu0 %v1275
    %1464 = vmatprep.subr.mxu0 0.0
    %1465 = vmatpush2.msra.mxu0 %v1274
    %1466 = vmatprep.subr.mxu0 0.0
    %1467 = vmatpush2.msra.mxu0 %v1273
    %1468 = vmatprep.mubr.f32.mxu0 %v1254
    %1469 = vmatmul.mubr.f32.gmra.mxu0 %v1253
    %v1470 = vpop.f32.mrf.mxu0
    %v1471 = vadd.f32 %v1396, %v1470
    %v1472 = vpop.f32.mrf.mxu0
    %1473 = vmatprep.mubr.f32.mxu0 %v1256
    %1474 = vmatmul.mubr.f32.gmra.mxu0 %v1255
    %v1475 = vpop.f32.mrf.mxu0
    %v1476 = vadd.f32 %v1401, %v1475
    %v1477 = vpop.f32.mrf.mxu0
    %1478 = vdwg.mxu0
    %v1479 = vld [vmem:[#allocation16] sm:$0x1]
    %v1481 = vlaneseq
    %v1482 = vshrl.u32 %v1481, 7
    %v1483 = vsub.s32 0, %v1482
    %v1484 = vrot.slane %v1479, %v1483
    %v1486 = vadd.f32 %v1471, %v1484
    %v1487 = vadd.f32 %v1476, %v1484
    %v1488 = vmax.f32 %v1486, 0.0
    %v1489 = vmax.f32 %v1487, 0.0
    %v1490 = vadd.s32 %v262, 8
    %vm1491 = vcmp.lt.s32.totalorder %v262, 0
    %v1492 = vsub.s32 0, %v262
    %v1493 = vsel %vm1491, %v1492, %v262
    %v1494 = vshrl.u32 %v1493, 3
    %v1495 = vand.u32 %v1493, 7
    %v1496 = vsub.s32 0, %v1495
    %v1497 = vsel %vm1491, %v1496, %v1495
    %vm1498 = vcmp.lt.s32.totalorder %v1490, 0
    %v1499 = vsub.s32 0, %v1490
    %v1500 = vsel %vm1498, %v1499, %v1490
    %v1501 = vshrl.u32 %v1500, 3
    %v1502 = vand.u32 %v1500, 7
    %v1503 = vsub.s32 0, %v1502
    %v1504 = vsel %vm1498, %v1503, %v1502
    %vm1505 = vcmp.ne.s32.totalorder %v1497, 0
    %vm1506 = vcmp.ne.s32.totalorder %v1504, 0
    %vm1507 = vcmp.lt.s32.totalorder %v1497, 0
    %vm1508 = vcmp.lt.s32.totalorder %v1504, 0
    %vm1509 = vmand %vm1507, %vm1505
    %vm1510 = vmand %vm1508, %vm1506
    %v1511 = vadd.s32 %v1497, 8
    %v1512 = vadd.s32 %v1504, 8
    %v1513 = vsel %vm1509, %v1511, %v1497
    %v1514 = vsel %vm1510, %v1512, %v1504
    %vm1515 = vcmp.lt.s32.totalorder %v1513, 5
    %vm1516 = vcmp.lt.s32.totalorder %v1514, 5
    %v1517 = vsel %vm1515, %v1488, 0.0
    %v1518 = vsel %vm1516, %v1489, 0.0
    %v1519 = vrot.slane %v1517, 4
    %v1520 = vmax.f32 %v1517, %v1519
    %v1521 = vrot.slane %v1520, 2
    %v1522 = vmax.f32 %v1520, %v1521
    %v1523 = vrot.slane %v1522, 1
    %v1524 = vmax.f32 %v1522, %v1523
    %v1525 = vrot.slane %v1518, 4
    %v1526 = vmax.f32 %v1518, %v1525
    %v1527 = vrot.slane %v1526, 2
    %v1528 = vmax.f32 %v1526, %v1527
    %v1529 = vrot.slane %v1528, 1
    %v1530 = vmax.f32 %v1528, %v1529
    %v1531 = vld [vmem:[#allocation17] sm:$0xff]
    %v1532 = vld [vmem:[#allocation17 + $0x8] sm:$0xff]
    %v1533 = vld [vmem:[#allocation17 + $0x10] sm:$0xff]
    %v1534 = vld [vmem:[#allocation17 + $0x18] sm:$0xff]
    %v1535 = vld [vmem:[#allocation17 + $0x20] sm:$0xff]
    %v1536 = vld [vmem:[#allocation17 + $0x28] sm:$0xff]
    %v1537 = vld [vmem:[#allocation17 + $0x30] sm:$0xff]
    %v1538 = vld [vmem:[#allocation17 + $0x38] sm:$0xff]
    %v1539 = vld [vmem:[#allocation17 + $0x40] sm:$0xff]
    %v1540 = vld [vmem:[#allocation17 + $0x48] sm:$0xff]
    %v1541 = vld [vmem:[#allocation17 + $0x50] sm:$0xff]
    %v1542 = vld [vmem:[#allocation17 + $0x58] sm:$0xff]
    %v1543 = vld [vmem:[#allocation17 + $0x60] sm:$0xff]
    %v1544 = vld [vmem:[#allocation17 + $0x68] sm:$0xff]
    %v1545 = vld [vmem:[#allocation17 + $0x70] sm:$0xff]
    %v1546 = vld [vmem:[#allocation17 + $0x78] sm:$0xff]
    %v1547 = vld [vmem:[#allocation17 + $0x80] sm:$0xff]
    %v1548 = vld [vmem:[#allocation17 + $0x88] sm:$0xff]
    %v1549 = vld [vmem:[#allocation17 + $0x90] sm:$0xff]
    %v1550 = vld [vmem:[#allocation17 + $0x98] sm:$0xff]
    %v1551 = vld [vmem:[#allocation17 + $0xa0] sm:$0xff]
    %v1552 = vld [vmem:[#allocation17 + $0xa8] sm:$0xff]
    %v1553 = vld [vmem:[#allocation17 + $0xb0] sm:$0xff]
    %v1554 = vld [vmem:[#allocation17 + $0xb8] sm:$0xff]
    %v1555 = vld [vmem:[#allocation17 + $0xc0] sm:$0xff]
    %v1556 = vld [vmem:[#allocation17 + $0xc8] sm:$0xff]
    %v1557 = vld [vmem:[#allocation17 + $0xd0] sm:$0xff]
    %v1558 = vld [vmem:[#allocation17 + $0xd8] sm:$0xff]
    %v1559 = vld [vmem:[#allocation17 + $0xe0] sm:$0xff]
    %v1560 = vld [vmem:[#allocation17 + $0xe8] sm:$0xff]
    %v1561 = vld [vmem:[#allocation17 + $0xf0] sm:$0xff]
    %v1562 = vld [vmem:[#allocation17 + $0xf8] sm:$0xff]
    %v1563 = vld [vmem:[#allocation17 + $0x100] sm:$0xff]
    %v1564 = vld [vmem:[#allocation17 + $0x108] sm:$0xff]
    %v1565 = vld [vmem:[#allocation17 + $0x110] sm:$0xff]
    %v1566 = vld [vmem:[#allocation17 + $0x118] sm:$0xff]
    %v1567 = vld [vmem:[#allocation17 + $0x120] sm:$0xff]
    %v1568 = vld [vmem:[#allocation17 + $0x128] sm:$0xff]
    %v1569 = vld [vmem:[#allocation17 + $0x130] sm:$0xff]
    %v1570 = vld [vmem:[#allocation17 + $0x138] sm:$0xff]
    %v1571 = vld [vmem:[#allocation17 + $0x140] sm:$0xff]
    %v1572 = vld [vmem:[#allocation17 + $0x148] sm:$0xff]
    %v1573 = vld [vmem:[#allocation17 + $0x150] sm:$0xff]
    %v1574 = vld [vmem:[#allocation17 + $0x158] sm:$0xff]
    %v1575 = vld [vmem:[#allocation17 + $0x160] sm:$0xff]
    %v1576 = vld [vmem:[#allocation17 + $0x168] sm:$0xff]
    %v1577 = vld [vmem:[#allocation17 + $0x170] sm:$0xff]
    %v1578 = vld [vmem:[#allocation17 + $0x178] sm:$0xff]
    %v1579 = vld [vmem:[#allocation17 + $0x180] sm:$0xff]
    %v1580 = vld [vmem:[#allocation17 + $0x188] sm:$0xff]
    %v1581 = vld [vmem:[#allocation17 + $0x190] sm:$0xff]
    %v1582 = vld [vmem:[#allocation17 + $0x198] sm:$0xff]
    %v1583 = vld [vmem:[#allocation17 + $0x1a0] sm:$0xff]
    %v1584 = vld [vmem:[#allocation17 + $0x1a8] sm:$0xff]
    %v1585 = vld [vmem:[#allocation17 + $0x1b0] sm:$0xff]
    %v1586 = vld [vmem:[#allocation17 + $0x1b8] sm:$0xff]
    %v1587 = vld [vmem:[#allocation17 + $0x1c0] sm:$0xff]
    %v1588 = vld [vmem:[#allocation17 + $0x1c8] sm:$0xff]
    %v1589 = vld [vmem:[#allocation17 + $0x1d0] sm:$0xff]
    %v1590 = vld [vmem:[#allocation17 + $0x1d8] sm:$0xff]
    %v1591 = vld [vmem:[#allocation17 + $0x1e0] sm:$0xff]
    %v1592 = vld [vmem:[#allocation17 + $0x1e8] sm:$0xff]
    %v1593 = vld [vmem:[#allocation17 + $0x1f0] sm:$0xff]
    %v1594 = vld [vmem:[#allocation17 + $0x1f8] sm:$0xff]
    %v1595 = vld [vmem:[%s11] sm:$0xf]
    %v1597 = vlaneseq
    %v1598 = vshrl.u32 %v1597, 7
    %v1599 = vsub.s32 0, %v1598
    %v1600 = vrot.slane %v1595, %v1599
    %v1601 = vlaneseq
    %v1602 = vshrl.u32 %v1601, 7
    %v1603 = vsub.s32 1, %v1602
    %v1604 = vrot.slane %v1595, %v1603
    %v1605 = vlaneseq
    %v1606 = vshrl.u32 %v1605, 7
    %v1607 = vsub.s32 2, %v1606
    %v1608 = vrot.slane %v1595, %v1607
    %v1609 = vlaneseq
    %v1610 = vshrl.u32 %v1609, 7
    %v1611 = vsub.s32 3, %v1610
    %v1612 = vrot.slane %v1595, %v1611
    %vm1619 = vcmask 1041409
    %v1620 = vsel %vm1619, %v1530, %v1524
    %1622 = vmatprep.subr.mxu0 %v1592
    %1623 = vmatpush1.msra.mxu0 %v1591
    %1624 = vmatprep.subr.mxu0 %v1588
    %1625 = vmatpush1.msra.mxu0 %v1587
    %1626 = vmatprep.subr.mxu0 %v1584
    %1627 = vmatpush1.msra.mxu0 %v1583
    %1628 = vmatprep.subr.mxu0 %v1580
    %1629 = vmatpush1.msra.mxu0 %v1579
    %1630 = vmatprep.subr.mxu0 %v1576
    %1631 = vmatpush1.msra.mxu0 %v1575
    %1632 = vmatprep.subr.mxu0 %v1572
    %1633 = vmatpush1.msra.mxu0 %v1571
    %1634 = vmatprep.subr.mxu0 %v1568
    %1635 = vmatpush1.msra.mxu0 %v1567
    %1636 = vmatprep.subr.mxu0 %v1564
    %1637 = vmatpush1.msra.mxu0 %v1563
    %1638 = vmatprep.subr.mxu0 %v1560
    %1639 = vmatpush1.msra.mxu0 %v1559
    %1640 = vmatprep.subr.mxu0 %v1556
    %1641 = vmatpush1.msra.mxu0 %v1555
    %1642 = vmatprep.subr.mxu0 %v1552
    %1643 = vmatpush1.msra.mxu0 %v1551
    %1644 = vmatprep.subr.mxu0 %v1548
    %1645 = vmatpush1.msra.mxu0 %v1547
    %1646 = vmatprep.subr.mxu0 %v1544
    %1647 = vmatpush1.msra.mxu0 %v1543
    %1648 = vmatprep.subr.mxu0 %v1540
    %1649 = vmatpush1.msra.mxu0 %v1539
    %1650 = vmatprep.subr.mxu0 %v1536
    %1651 = vmatpush1.msra.mxu0 %v1535
    %1652 = vmatprep.subr.mxu0 %v1532
    %1653 = vmatpush1.msra.mxu0 %v1531
    %1654 = vmatprep.subr.mxu0 0.0
    %1655 = vmatpush2.msra.mxu0 0.0
    %1656 = vmatprep.subr.mxu0 0.0
    %1657 = vmatpush2.msra.mxu0 0.0
    %1658 = vmatprep.subr.mxu0 0.0
    %1659 = vmatpush2.msra.mxu0 0.0
    %1660 = vmatprep.subr.mxu0 0.0
    %1661 = vmatpush2.msra.mxu0 0.0
    %1662 = vmatprep.subr.mxu0 0.0
    %1663 = vmatpush2.msra.mxu0 0.0
    %1664 = vmatprep.subr.mxu0 0.0
    %1665 = vmatpush2.msra.mxu0 0.0
    %1666 = vmatprep.subr.mxu0 0.0
    %1667 = vmatpush2.msra.mxu0 0.0
    %1668 = vmatprep.subr.mxu0 0.0
    %1669 = vmatpush2.msra.mxu0 0.0
    %1670 = vmatprep.subr.mxu0 0.0
    %1671 = vmatpush2.msra.mxu0 0.0
    %1672 = vmatprep.subr.mxu0 0.0
    %1673 = vmatpush2.msra.mxu0 0.0
    %1674 = vmatprep.subr.mxu0 0.0
    %1675 = vmatpush2.msra.mxu0 0.0
    %1676 = vmatprep.subr.mxu0 0.0
    %1677 = vmatpush2.msra.mxu0 0.0
    %1678 = vmatprep.subr.mxu0 0.0
    %1679 = vmatpush2.msra.mxu0 0.0
    %1680 = vmatprep.subr.mxu0 0.0
    %1681 = vmatpush2.msra.mxu0 0.0
    %1682 = vmatprep.subr.mxu0 0.0
    %1683 = vmatpush2.msra.mxu0 0.0
    %1684 = vmatprep.subr.mxu0 0.0
    %1685 = vmatpush2.msra.mxu0 0.0
    %1686 = vmatprep.mubr.f32.mxu0 0.0
    %1687 = vmatmul.mubr.f32.gmra.mxu0 %v1620
    %v1688 = vpop.f32.mrf.mxu0
    %v1689 = vadd.f32 %v1600, %v1688
    %v1690 = vpop.f32.mrf.mxu0
    %v1691 = vadd.f32 %v1604, %v1690
    %1692 = vdwg.mxu0
    %1693 = vmatprep.subr.mxu0 %v1594
    %1694 = vmatpush1.msra.mxu0 %v1593
    %1695 = vmatprep.subr.mxu0 %v1590
    %1696 = vmatpush1.msra.mxu0 %v1589
    %1697 = vmatprep.subr.mxu0 %v1586
    %1698 = vmatpush1.msra.mxu0 %v1585
    %1699 = vmatprep.subr.mxu0 %v1582
    %1700 = vmatpush1.msra.mxu0 %v1581
    %1701 = vmatprep.subr.mxu0 %v1578
    %1702 = vmatpush1.msra.mxu0 %v1577
    %1703 = vmatprep.subr.mxu0 %v1574
    %1704 = vmatpush1.msra.mxu0 %v1573
    %1705 = vmatprep.subr.mxu0 %v1570
    %1706 = vmatpush1.msra.mxu0 %v1569
    %1707 = vmatprep.subr.mxu0 %v1566
    %1708 = vmatpush1.msra.mxu0 %v1565
    %1709 = vmatprep.subr.mxu0 %v1562
    %1710 = vmatpush1.msra.mxu0 %v1561
    %1711 = vmatprep.subr.mxu0 %v1558
    %1712 = vmatpush1.msra.mxu0 %v1557
    %1713 = vmatprep.subr.mxu0 %v1554
    %1714 = vmatpush1.msra.mxu0 %v1553
    %1715 = vmatprep.subr.mxu0 %v1550
    %1716 = vmatpush1.msra.mxu0 %v1549
    %1717 = vmatprep.subr.mxu0 %v1546
    %1718 = vmatpush1.msra.mxu0 %v1545
    %1719 = vmatprep.subr.mxu0 %v1542
    %1720 = vmatpush1.msra.mxu0 %v1541
    %1721 = vmatprep.subr.mxu0 %v1538
    %1722 = vmatpush1.msra.mxu0 %v1537
    %1723 = vmatprep.subr.mxu0 %v1534
    %1724 = vmatpush1.msra.mxu0 %v1533
    %1725 = vmatprep.subr.mxu0 0.0
    %1726 = vmatpush2.msra.mxu0 0.0
    %1727 = vmatprep.subr.mxu0 0.0
    %1728 = vmatpush2.msra.mxu0 0.0
    %1729 = vmatprep.subr.mxu0 0.0
    %1730 = vmatpush2.msra.mxu0 0.0
    %1731 = vmatprep.subr.mxu0 0.0
    %1732 = vmatpush2.msra.mxu0 0.0
    %1733 = vmatprep.subr.mxu0 0.0
    %1734 = vmatpush2.msra.mxu0 0.0
    %1735 = vmatprep.subr.mxu0 0.0
    %1736 = vmatpush2.msra.mxu0 0.0
    %1737 = vmatprep.subr.mxu0 0.0
    %1738 = vmatpush2.msra.mxu0 0.0
    %1739 = vmatprep.subr.mxu0 0.0
    %1740 = vmatpush2.msra.mxu0 0.0
    %1741 = vmatprep.subr.mxu0 0.0
    %1742 = vmatpush2.msra.mxu0 0.0
    %1743 = vmatprep.subr.mxu0 0.0
    %1744 = vmatpush2.msra.mxu0 0.0
    %1745 = vmatprep.subr.mxu0 0.0
    %1746 = vmatpush2.msra.mxu0 0.0
    %1747 = vmatprep.subr.mxu0 0.0
    %1748 = vmatpush2.msra.mxu0 0.0
    %1749 = vmatprep.subr.mxu0 0.0
    %1750 = vmatpush2.msra.mxu0 0.0
    %1751 = vmatprep.subr.mxu0 0.0
    %1752 = vmatpush2.msra.mxu0 0.0
    %1753 = vmatprep.subr.mxu0 0.0
    %1754 = vmatpush2.msra.mxu0 0.0
    %1755 = vmatprep.subr.mxu0 0.0
    %1756 = vmatpush2.msra.mxu0 0.0
    %1757 = vmatprep.mubr.f32.mxu0 0.0
    %1758 = vmatmul.mubr.f32.gmra.mxu0 %v1620
    %v1759 = vpop.f32.mrf.mxu0
    %v1760 = vadd.f32 %v1608, %v1759
    %v1761 = vpop.f32.mrf.mxu0
    %v1762 = vadd.f32 %v1612, %v1761
    %1763 = vdwg.mxu0
    %vm1764 = vcmask 1041408
    %v1765 = vsel %vm1764, %v1689, 0.0
    %v1766 = vrot.slane %v1765, 4
    %v1767 = vadd.f32 %v1765, %v1766
    %v1768 = vrot.slane %v1767, 2
    %v1769 = vadd.f32 %v1767, %v1768
    %v1770 = vrot.slane %v1769, 1
    %v1771 = vadd.f32 %v1769, %v1770
    %v1772 = vsel %vm1764, %v1691, 0.0
    %v1773 = vrot.slane %v1772, 4
    %v1774 = vadd.f32 %v1772, %v1773
    %v1775 = vrot.slane %v1774, 2
    %v1776 = vadd.f32 %v1774, %v1775
    %v1777 = vrot.slane %v1776, 1
    %v1778 = vadd.f32 %v1776, %v1777
    %v1779 = vsel %vm1764, %v1760, 0.0
    %v1780 = vrot.slane %v1779, 4
    %v1781 = vadd.f32 %v1779, %v1780
    %v1782 = vrot.slane %v1781, 2
    %v1783 = vadd.f32 %v1781, %v1782
    %v1784 = vrot.slane %v1783, 1
    %v1785 = vadd.f32 %v1783, %v1784
    %v1786 = vsel %vm1764, %v1762, 0.0
    %v1787 = vrot.slane %v1786, 4
    %v1788 = vadd.f32 %v1786, %v1787
    %v1789 = vrot.slane %v1788, 2
    %v1790 = vadd.f32 %v1788, %v1789
    %v1791 = vrot.slane %v1790, 1
    %v1792 = vadd.f32 %v1790, %v1791
    %v1793 = vrcp.pop 2.0
    %v1794 = vmul.f32 %v1771, %v1793
    %v1795 = vmul.f32 %v1778, %v1793
    %v1796 = vmul.f32 %v1785, %v1793
    %v1797 = vmul.f32 %v1792, %v1793
    %v1798 = vsub.f32 %v1689, %v1794
    %v1799 = vsub.f32 %v1691, %v1795
    %v1800 = vsub.f32 %v1760, %v1796
    %v1801 = vsub.f32 %v1762, %v1797
    %v1802 = vmul.f32 %v1798, %v1798
    %v1803 = vmul.f32 %v1799, %v1799
    %v1804 = vmul.f32 %v1800, %v1800
    %v1805 = vmul.f32 %v1801, %v1801
    %v1806 = vsel %vm1764, %v1802, 0.0
    %v1807 = vrot.slane %v1806, 4
    %v1808 = vadd.f32 %v1806, %v1807
    %v1809 = vrot.slane %v1808, 2
    %v1810 = vadd.f32 %v1808, %v1809
    %v1811 = vrot.slane %v1810, 1
    %v1812 = vadd.f32 %v1810, %v1811
    %v1813 = vsel %vm1764, %v1803, 0.0
    %v1814 = vrot.slane %v1813, 4
    %v1815 = vadd.f32 %v1813, %v1814
    %v1816 = vrot.slane %v1815, 2
    %v1817 = vadd.f32 %v1815, %v1816
    %v1818 = vrot.slane %v1817, 1
    %v1819 = vadd.f32 %v1817, %v1818
    %v1820 = vsel %vm1764, %v1804, 0.0
    %v1821 = vrot.slane %v1820, 4
    %v1822 = vadd.f32 %v1820, %v1821
    %v1823 = vrot.slane %v1822, 2
    %v1824 = vadd.f32 %v1822, %v1823
    %v1825 = vrot.slane %v1824, 1
    %v1826 = vadd.f32 %v1824, %v1825
    %v1827 = vsel %vm1764, %v1805, 0.0
    %v1828 = vrot.slane %v1827, 4
    %v1829 = vadd.f32 %v1827, %v1828
    %v1830 = vrot.slane %v1829, 2
    %v1831 = vadd.f32 %v1829, %v1830
    %v1832 = vrot.slane %v1831, 1
    %v1833 = vadd.f32 %v1831, %v1832
    %v1834 = vmul.f32 %v1812, %v1793
    %v1835 = vmul.f32 %v1819, %v1793
    %v1836 = vmul.f32 %v1826, %v1793
    %v1837 = vmul.f32 %v1833, %v1793
    %v1838 = vadd.f32 %v1834, 1e-05
    %v1839 = vadd.f32 %v1835, 1e-05
    %v1840 = vadd.f32 %v1836, 1e-05
    %v1841 = vadd.f32 %v1837, 1e-05
    %v1842 = vrsqrt.pop %v1838
    %v1843 = vrsqrt.pop %v1839
    %v1844 = vrsqrt.pop %v1840
    %v1845 = vrsqrt.pop %v1841
    %v1846 = vmul.f32 %v1798, %v1842
    %v1847 = vmul.f32 %v1799, %v1843
    %v1848 = vmul.f32 %v1800, %v1844
    %v1849 = vmul.f32 %v1801, %v1845
    %v1850 = vld [vmem:[%s12] sm:$0xf]
    %v1852 = vlaneseq
    %v1853 = vshrl.u32 %v1852, 7
    %v1854 = vsub.s32 0, %v1853
    %v1855 = vrot.slane %v1850, %v1854
    %v1856 = vlaneseq
    %v1857 = vshrl.u32 %v1856, 7
    %v1858 = vsub.s32 1, %v1857
    %v1859 = vrot.slane %v1850, %v1858
    %v1860 = vlaneseq
    %v1861 = vshrl.u32 %v1860, 7
    %v1862 = vsub.s32 2, %v1861
    %v1863 = vrot.slane %v1850, %v1862
    %v1864 = vlaneseq
    %v1865 = vshrl.u32 %v1864, 7
    %v1866 = vsub.s32 3, %v1865
    %v1867 = vrot.slane %v1850, %v1866
    %v1872 = vmul.f32 %v1846, %v1855
    %v1873 = vmul.f32 %v1847, %v1859
    %v1874 = vmul.f32 %v1848, %v1863
    %v1875 = vmul.f32 %v1849, %v1867
    %v1876 = vld [vmem:[%s13] sm:$0xf]
    %v1878 = vlaneseq
    %v1879 = vshrl.u32 %v1878, 7
    %v1880 = vsub.s32 0, %v1879
    %v1881 = vrot.slane %v1876, %v1880
    %v1882 = vlaneseq
    %v1883 = vshrl.u32 %v1882, 7
    %v1884 = vsub.s32 1, %v1883
    %v1885 = vrot.slane %v1876, %v1884
    %v1886 = vlaneseq
    %v1887 = vshrl.u32 %v1886, 7
    %v1888 = vsub.s32 2, %v1887
    %v1889 = vrot.slane %v1876, %v1888
    %v1890 = vlaneseq
    %v1891 = vshrl.u32 %v1890, 7
    %v1892 = vsub.s32 3, %v1891
    %v1893 = vrot.slane %v1876, %v1892
    %v1898 = vadd.f32 %v1872, %v1881
    %v1899 = vadd.f32 %v1873, %v1885
    %v1900 = vadd.f32 %v1874, %v1889
    %v1901 = vadd.f32 %v1875, %v1893
    %v1902 = vmax.f32 %v1898, 0.0
    %v1903 = vmax.f32 %v1899, 0.0
    %v1904 = vmax.f32 %v1900, 0.0
    %v1905 = vmax.f32 %v1901, 0.0
    %v1906 = vld [vmem:[#allocation19] sm:$0xff]
    %v1907 = vld [vmem:[#allocation19 + $0x8] sm:$0xff]
    %v1908 = vld [vmem:[#allocation19 + $0x10] sm:$0xff]
    %v1909 = vld [vmem:[#allocation19 + $0x18] sm:$0xff]
    %v1910 = vld [vmem:[#allocation19 + $0x20] sm:$0xff]
    %v1911 = vld [vmem:[#allocation19 + $0x28] sm:$0xff]
    %v1912 = vld [vmem:[#allocation19 + $0x30] sm:$0xff]
    %v1913 = vld [vmem:[#allocation19 + $0x38] sm:$0xff]
    %v1914 = vld [vmem:[#allocation19 + $0x40] sm:$0xff]
    %v1915 = vld [vmem:[#allocation19 + $0x48] sm:$0xff]
    %v1916 = vld [vmem:[#allocation19 + $0x50] sm:$0xff]
    %v1917 = vld [vmem:[#allocation19 + $0x58] sm:$0xff]
    %v1918 = vld [vmem:[#allocation19 + $0x60] sm:$0xff]
    %v1919 = vld [vmem:[#allocation19 + $0x68] sm:$0xff]
    %v1920 = vld [vmem:[#allocation19 + $0x70] sm:$0xff]
    %v1921 = vld [vmem:[#allocation19 + $0x78] sm:$0xff]
    %v1922 = vld [vmem:[#allocation19 + $0x80] sm:$0xff]
    %v1923 = vld [vmem:[#allocation19 + $0x88] sm:$0xff]
    %v1924 = vld [vmem:[#allocation19 + $0x90] sm:$0xff]
    %v1925 = vld [vmem:[#allocation19 + $0x98] sm:$0xff]
    %v1926 = vld [vmem:[#allocation19 + $0xa0] sm:$0xff]
    %v1927 = vld [vmem:[#allocation19 + $0xa8] sm:$0xff]
    %v1928 = vld [vmem:[#allocation19 + $0xb0] sm:$0xff]
    %v1929 = vld [vmem:[#allocation19 + $0xb8] sm:$0xff]
    %v1930 = vld [vmem:[#allocation19 + $0xc0] sm:$0xff]
    %v1931 = vld [vmem:[#allocation19 + $0xc8] sm:$0xff]
    %v1932 = vld [vmem:[#allocation19 + $0xd0] sm:$0xff]
    %v1933 = vld [vmem:[#allocation19 + $0xd8] sm:$0xff]
    %v1934 = vld [vmem:[#allocation19 + $0xe0] sm:$0xff]
    %v1935 = vld [vmem:[#allocation19 + $0xe8] sm:$0xff]
    %v1936 = vld [vmem:[#allocation19 + $0xf0] sm:$0xff]
    %v1937 = vld [vmem:[#allocation19 + $0xf8] sm:$0xff]
    %v1938 = vld [vmem:[#allocation19 + $0x100] sm:$0xff]
    %v1939 = vld [vmem:[#allocation19 + $0x108] sm:$0xff]
    %v1940 = vld [vmem:[#allocation19 + $0x110] sm:$0xff]
    %v1941 = vld [vmem:[#allocation19 + $0x118] sm:$0xff]
    %v1942 = vld [vmem:[#allocation19 + $0x120] sm:$0xff]
    %v1943 = vld [vmem:[#allocation19 + $0x128] sm:$0xff]
    %v1944 = vld [vmem:[#allocation19 + $0x130] sm:$0xff]
    %v1945 = vld [vmem:[#allocation19 + $0x138] sm:$0xff]
    %v1946 = vld [vmem:[#allocation19 + $0x140] sm:$0xff]
    %v1947 = vld [vmem:[#allocation19 + $0x148] sm:$0xff]
    %v1948 = vld [vmem:[#allocation19 + $0x150] sm:$0xff]
    %v1949 = vld [vmem:[#allocation19 + $0x158] sm:$0xff]
    %v1950 = vld [vmem:[#allocation19 + $0x160] sm:$0xff]
    %v1951 = vld [vmem:[#allocation19 + $0x168] sm:$0xff]
    %v1952 = vld [vmem:[#allocation19 + $0x170] sm:$0xff]
    %v1953 = vld [vmem:[#allocation19 + $0x178] sm:$0xff]
    %v1954 = vld [vmem:[#allocation19 + $0x180] sm:$0xff]
    %v1955 = vld [vmem:[#allocation19 + $0x188] sm:$0xff]
    %v1956 = vld [vmem:[#allocation19 + $0x190] sm:$0xff]
    %v1957 = vld [vmem:[#allocation19 + $0x198] sm:$0xff]
    %v1958 = vld [vmem:[#allocation19 + $0x1a0] sm:$0xff]
    %v1959 = vld [vmem:[#allocation19 + $0x1a8] sm:$0xff]
    %v1960 = vld [vmem:[#allocation19 + $0x1b0] sm:$0xff]
    %v1961 = vld [vmem:[#allocation19 + $0x1b8] sm:$0xff]
    %v1962 = vld [vmem:[#allocation19 + $0x1c0] sm:$0xff]
    %v1963 = vld [vmem:[#allocation19 + $0x1c8] sm:$0xff]
    %v1964 = vld [vmem:[#allocation19 + $0x1d0] sm:$0xff]
    %v1965 = vld [vmem:[#allocation19 + $0x1d8] sm:$0xff]
    %v1966 = vld [vmem:[#allocation19 + $0x1e0] sm:$0xff]
    %v1967 = vld [vmem:[#allocation19 + $0x1e8] sm:$0xff]
    %v1968 = vld [vmem:[#allocation19 + $0x1f0] sm:$0xff]
    %v1969 = vld [vmem:[#allocation19 + $0x1f8] sm:$0xff]
    %v1970 = vld [vmem:[#allocation19 + $0x200] sm:$0xff]
    %v1971 = vld [vmem:[#allocation19 + $0x208] sm:$0xff]
    %v1972 = vld [vmem:[#allocation19 + $0x210] sm:$0xff]
    %v1973 = vld [vmem:[#allocation19 + $0x218] sm:$0xff]
    %v1974 = vld [vmem:[#allocation19 + $0x220] sm:$0xff]
    %v1975 = vld [vmem:[#allocation19 + $0x228] sm:$0xff]
    %v1976 = vld [vmem:[#allocation19 + $0x230] sm:$0xff]
    %v1977 = vld [vmem:[#allocation19 + $0x238] sm:$0xff]
    %v1978 = vld [vmem:[#allocation19 + $0x240] sm:$0xff]
    %v1979 = vld [vmem:[#allocation19 + $0x248] sm:$0xff]
    %v1980 = vld [vmem:[#allocation19 + $0x250] sm:$0xff]
    %v1981 = vld [vmem:[#allocation19 + $0x258] sm:$0xff]
    %v1982 = vld [vmem:[#allocation19 + $0x260] sm:$0xff]
    %v1983 = vld [vmem:[#allocation19 + $0x268] sm:$0xff]
    %v1984 = vld [vmem:[#allocation19 + $0x270] sm:$0xff]
    %v1985 = vld [vmem:[#allocation19 + $0x278] sm:$0xff]
    %v1986 = vld [vmem:[#allocation19 + $0x280] sm:$0xff]
    %v1987 = vld [vmem:[#allocation19 + $0x288] sm:$0xff]
    %v1988 = vld [vmem:[#allocation19 + $0x290] sm:$0xff]
    %v1989 = vld [vmem:[#allocation19 + $0x298] sm:$0xff]
    %v1990 = vld [vmem:[#allocation19 + $0x2a0] sm:$0xff]
    %v1991 = vld [vmem:[#allocation19 + $0x2a8] sm:$0xff]
    %v1992 = vld [vmem:[#allocation19 + $0x2b0] sm:$0xff]
    %v1993 = vld [vmem:[#allocation19 + $0x2b8] sm:$0xff]
    %v1994 = vld [vmem:[#allocation19 + $0x2c0] sm:$0xff]
    %v1995 = vld [vmem:[#allocation19 + $0x2c8] sm:$0xff]
    %v1996 = vld [vmem:[#allocation19 + $0x2d0] sm:$0xff]
    %v1997 = vld [vmem:[#allocation19 + $0x2d8] sm:$0xff]
    %v1998 = vld [vmem:[#allocation19 + $0x2e0] sm:$0xff]
    %v1999 = vld [vmem:[#allocation19 + $0x2e8] sm:$0xff]
    %v2000 = vld [vmem:[#allocation19 + $0x2f0] sm:$0xff]
    %v2001 = vld [vmem:[#allocation19 + $0x2f8] sm:$0xff]
    %v2002 = vld [vmem:[#allocation19 + $0x300] sm:$0xff]
    %v2003 = vld [vmem:[#allocation19 + $0x308] sm:$0xff]
    %v2004 = vld [vmem:[#allocation19 + $0x310] sm:$0xff]
    %v2005 = vld [vmem:[#allocation19 + $0x318] sm:$0xff]
    %v2006 = vld [vmem:[#allocation19 + $0x320] sm:$0xff]
    %v2007 = vld [vmem:[#allocation19 + $0x328] sm:$0xff]
    %v2008 = vld [vmem:[#allocation19 + $0x330] sm:$0xff]
    %v2009 = vld [vmem:[#allocation19 + $0x338] sm:$0xff]
    %v2010 = vld [vmem:[#allocation19 + $0x340] sm:$0xff]
    %v2011 = vld [vmem:[#allocation19 + $0x348] sm:$0xff]
    %v2012 = vld [vmem:[#allocation19 + $0x350] sm:$0xff]
    %v2013 = vld [vmem:[#allocation19 + $0x358] sm:$0xff]
    %v2014 = vld [vmem:[#allocation19 + $0x360] sm:$0xff]
    %v2015 = vld [vmem:[#allocation19 + $0x368] sm:$0xff]
    %v2016 = vld [vmem:[#allocation19 + $0x370] sm:$0xff]
    %v2017 = vld [vmem:[#allocation19 + $0x378] sm:$0xff]
    %v2018 = vld [vmem:[#allocation19 + $0x380] sm:$0xff]
    %v2019 = vld [vmem:[#allocation19 + $0x388] sm:$0xff]
    %v2020 = vld [vmem:[#allocation19 + $0x390] sm:$0xff]
    %v2021 = vld [vmem:[#allocation19 + $0x398] sm:$0xff]
    %v2022 = vld [vmem:[#allocation19 + $0x3a0] sm:$0xff]
    %v2023 = vld [vmem:[#allocation19 + $0x3a8] sm:$0xff]
    %v2024 = vld [vmem:[#allocation19 + $0x3b0] sm:$0xff]
    %v2025 = vld [vmem:[#allocation19 + $0x3b8] sm:$0xff]
    %v2026 = vld [vmem:[#allocation19 + $0x3c0] sm:$0xff]
    %v2027 = vld [vmem:[#allocation19 + $0x3c8] sm:$0xff]
    %v2028 = vld [vmem:[#allocation19 + $0x3d0] sm:$0xff]
    %v2029 = vld [vmem:[#allocation19 + $0x3d8] sm:$0xff]
    %v2030 = vld [vmem:[#allocation19 + $0x3e0] sm:$0xff]
    %v2031 = vld [vmem:[#allocation19 + $0x3e8] sm:$0xff]
    %v2032 = vld [vmem:[#allocation19 + $0x3f0] sm:$0xff]
    %v2033 = vld [vmem:[#allocation19 + $0x3f8] sm:$0xff]
    %v2034 = vld [vmem:[%s15] sm:$0x3]
    %v2036 = vlaneseq
    %v2037 = vshrl.u32 %v2036, 7
    %v2038 = vsub.s32 0, %v2037
    %v2039 = vrot.slane %v2034, %v2038
    %v2040 = vlaneseq
    %v2041 = vshrl.u32 %v2040, 7
    %v2042 = vsub.s32 1, %v2041
    %v2043 = vrot.slane %v2034, %v2042
    %2046 = vmatprep.subr.mxu0 %v1937
    %2047 = vmatpush1.msra.mxu0 %v1936
    %2048 = vmatprep.subr.mxu0 %v1935
    %2049 = vmatpush1.msra.mxu0 %v1934
    %2050 = vmatprep.subr.mxu0 %v1933
    %2051 = vmatpush1.msra.mxu0 %v1932
    %2052 = vmatprep.subr.mxu0 %v1931
    %2053 = vmatpush1.msra.mxu0 %v1930
    %2054 = vmatprep.subr.mxu0 %v1929
    %2055 = vmatpush1.msra.mxu0 %v1928
    %2056 = vmatprep.subr.mxu0 %v1927
    %2057 = vmatpush1.msra.mxu0 %v1926
    %2058 = vmatprep.subr.mxu0 %v1925
    %2059 = vmatpush1.msra.mxu0 %v1924
    %2060 = vmatprep.subr.mxu0 %v1923
    %2061 = vmatpush1.msra.mxu0 %v1922
    %2062 = vmatprep.subr.mxu0 %v1921
    %2063 = vmatpush1.msra.mxu0 %v1920
    %2064 = vmatprep.subr.mxu0 %v1919
    %2065 = vmatpush1.msra.mxu0 %v1918
    %2066 = vmatprep.subr.mxu0 %v1917
    %2067 = vmatpush1.msra.mxu0 %v1916
    %2068 = vmatprep.subr.mxu0 %v1915
    %2069 = vmatpush1.msra.mxu0 %v1914
    %2070 = vmatprep.subr.mxu0 %v1913
    %2071 = vmatpush1.msra.mxu0 %v1912
    %2072 = vmatprep.subr.mxu0 %v1911
    %2073 = vmatpush1.msra.mxu0 %v1910
    %2074 = vmatprep.subr.mxu0 %v1909
    %2075 = vmatpush1.msra.mxu0 %v1908
    %2076 = vmatprep.subr.mxu0 %v1907
    %2077 = vmatpush1.msra.mxu0 %v1906
    %2078 = vmatprep.subr.mxu0 %v1969
    %2079 = vmatpush2.msra.mxu0 %v1968
    %2080 = vmatprep.subr.mxu0 %v1967
    %2081 = vmatpush2.msra.mxu0 %v1966
    %2082 = vmatprep.subr.mxu0 %v1965
    %2083 = vmatpush2.msra.mxu0 %v1964
    %2084 = vmatprep.subr.mxu0 %v1963
    %2085 = vmatpush2.msra.mxu0 %v1962
    %2086 = vmatprep.subr.mxu0 %v1961
    %2087 = vmatpush2.msra.mxu0 %v1960
    %2088 = vmatprep.subr.mxu0 %v1959
    %2089 = vmatpush2.msra.mxu0 %v1958
    %2090 = vmatprep.subr.mxu0 %v1957
    %2091 = vmatpush2.msra.mxu0 %v1956
    %2092 = vmatprep.subr.mxu0 %v1955
    %2093 = vmatpush2.msra.mxu0 %v1954
    %2094 = vmatprep.subr.mxu0 %v1953
    %2095 = vmatpush2.msra.mxu0 %v1952
    %2096 = vmatprep.subr.mxu0 %v1951
    %2097 = vmatpush2.msra.mxu0 %v1950
    %2098 = vmatprep.subr.mxu0 %v1949
    %2099 = vmatpush2.msra.mxu0 %v1948
    %2100 = vmatprep.subr.mxu0 %v1947
    %2101 = vmatpush2.msra.mxu0 %v1946
    %2102 = vmatprep.subr.mxu0 %v1945
    %2103 = vmatpush2.msra.mxu0 %v1944
    %2104 = vmatprep.subr.mxu0 %v1943
    %2105 = vmatpush2.msra.mxu0 %v1942
    %2106 = vmatprep.subr.mxu0 %v1941
    %2107 = vmatpush2.msra.mxu0 %v1940
    %2108 = vmatprep.subr.mxu0 %v1939
    %2109 = vmatpush2.msra.mxu0 %v1938
    %2110 = vmatprep.mubr.f32.mxu0 %v1903
    %2111 = vmatmul.mubr.f32.gmra.mxu0 %v1902
    %v2112 = vpop.f32.mrf.mxu0
    %v2113 = vadd.f32 %v2039, %v2112
    %v2114 = vpop.f32.mrf.mxu0
    %v2115 = vadd.f32 %v2043, %v2114
    %2116 = vdwg.mxu0
    %2117 = vmatprep.subr.mxu0 %v2001
    %2118 = vmatpush1.msra.mxu0 %v2000
    %2119 = vmatprep.subr.mxu0 %v1999
    %2120 = vmatpush1.msra.mxu0 %v1998
    %2121 = vmatprep.subr.mxu0 %v1997
    %2122 = vmatpush1.msra.mxu0 %v1996
    %2123 = vmatprep.subr.mxu0 %v1995
    %2124 = vmatpush1.msra.mxu0 %v1994
    %2125 = vmatprep.subr.mxu0 %v1993
    %2126 = vmatpush1.msra.mxu0 %v1992
    %2127 = vmatprep.subr.mxu0 %v1991
    %2128 = vmatpush1.msra.mxu0 %v1990
    %2129 = vmatprep.subr.mxu0 %v1989
    %2130 = vmatpush1.msra.mxu0 %v1988
    %2131 = vmatprep.subr.mxu0 %v1987
    %2132 = vmatpush1.msra.mxu0 %v1986
    %2133 = vmatprep.subr.mxu0 %v1985
    %2134 = vmatpush1.msra.mxu0 %v1984
    %2135 = vmatprep.subr.mxu0 %v1983
    %2136 = vmatpush1.msra.mxu0 %v1982
    %2137 = vmatprep.subr.mxu0 %v1981
    %2138 = vmatpush1.msra.mxu0 %v1980
    %2139 = vmatprep.subr.mxu0 %v1979
    %2140 = vmatpush1.msra.mxu0 %v1978
    %2141 = vmatprep.subr.mxu0 %v1977
    %2142 = vmatpush1.msra.mxu0 %v1976
    %2143 = vmatprep.subr.mxu0 %v1975
    %2144 = vmatpush1.msra.mxu0 %v1974
    %2145 = vmatprep.subr.mxu0 %v1973
    %2146 = vmatpush1.msra.mxu0 %v1972
    %2147 = vmatprep.subr.mxu0 %v1971
    %2148 = vmatpush1.msra.mxu0 %v1970
    %2149 = vmatprep.subr.mxu0 %v2033
    %2150 = vmatpush2.msra.mxu0 %v2032
    %2151 = vmatprep.subr.mxu0 %v2031
    %2152 = vmatpush2.msra.mxu0 %v2030
    %2153 = vmatprep.subr.mxu0 %v2029
    %2154 = vmatpush2.msra.mxu0 %v2028
    %2155 = vmatprep.subr.mxu0 %v2027
    %2156 = vmatpush2.msra.mxu0 %v2026
    %2157 = vmatprep.subr.mxu0 %v2025
    %2158 = vmatpush2.msra.mxu0 %v2024
    %2159 = vmatprep.subr.mxu0 %v2023
    %2160 = vmatpush2.msra.mxu0 %v2022
    %2161 = vmatprep.subr.mxu0 %v2021
    %2162 = vmatpush2.msra.mxu0 %v2020
    %2163 = vmatprep.subr.mxu0 %v2019
    %2164 = vmatpush2.msra.mxu0 %v2018
    %2165 = vmatprep.subr.mxu0 %v2017
    %2166 = vmatpush2.msra.mxu0 %v2016
    %2167 = vmatprep.subr.mxu0 %v2015
    %2168 = vmatpush2.msra.mxu0 %v2014
    %2169 = vmatprep.subr.mxu0 %v2013
    %2170 = vmatpush2.msra.mxu0 %v2012
    %2171 = vmatprep.subr.mxu0 %v2011
    %2172 = vmatpush2.msra.mxu0 %v2010
    %2173 = vmatprep.subr.mxu0 %v2009
    %2174 = vmatpush2.msra.mxu0 %v2008
    %2175 = vmatprep.subr.mxu0 %v2007
    %2176 = vmatpush2.msra.mxu0 %v2006
    %2177 = vmatprep.subr.mxu0 %v2005
    %2178 = vmatpush2.msra.mxu0 %v2004
    %2179 = vmatprep.subr.mxu0 %v2003
    %2180 = vmatpush2.msra.mxu0 %v2002
    %2181 = vmatprep.mubr.f32.mxu0 %v1905
    %2182 = vmatmul.mubr.f32.gmra.mxu0 %v1904
    %v2183 = vpop.f32.mrf.mxu0
    %v2184 = vadd.f32 %v2113, %v2183
    %v2185 = vpop.f32.mrf.mxu0
    %v2186 = vadd.f32 %v2115, %v2185
    %2187 = vdwg.mxu0
    %v2188 = vsel %vm1764, %v2184, 0.0
    %v2189 = vrot.slane %v2188, 4
    %v2190 = vadd.f32 %v2188, %v2189
    %v2191 = vrot.slane %v2190, 2
    %v2192 = vadd.f32 %v2190, %v2191
    %v2193 = vrot.slane %v2192, 1
    %v2194 = vadd.f32 %v2192, %v2193
    %v2195 = vsel %vm1764, %v2186, 0.0
    %v2196 = vrot.slane %v2195, 4
    %v2197 = vadd.f32 %v2195, %v2196
    %v2198 = vrot.slane %v2197, 2
    %v2199 = vadd.f32 %v2197, %v2198
    %v2200 = vrot.slane %v2199, 1
    %v2201 = vadd.f32 %v2199, %v2200
    %v2202 = vmul.f32 %v2194, %v1793
    %v2203 = vmul.f32 %v2201, %v1793
    %v2204 = vsub.f32 %v2184, %v2202
    %v2205 = vsub.f32 %v2186, %v2203
    %v2206 = vmul.f32 %v2204, %v2204
    %v2207 = vmul.f32 %v2205, %v2205
    %v2208 = vsel %vm1764, %v2206, 0.0
    %v2209 = vrot.slane %v2208, 4
    %v2210 = vadd.f32 %v2208, %v2209
    %v2211 = vrot.slane %v2210, 2
    %v2212 = vadd.f32 %v2210, %v2211
    %v2213 = vrot.slane %v2212, 1
    %v2214 = vadd.f32 %v2212, %v2213
    %v2215 = vsel %vm1764, %v2207, 0.0
    %v2216 = vrot.slane %v2215, 4
    %v2217 = vadd.f32 %v2215, %v2216
    %v2218 = vrot.slane %v2217, 2
    %v2219 = vadd.f32 %v2217, %v2218
    %v2220 = vrot.slane %v2219, 1
    %v2221 = vadd.f32 %v2219, %v2220
    %v2222 = vmul.f32 %v2214, %v1793
    %v2223 = vmul.f32 %v2221, %v1793
    %v2224 = vadd.f32 %v2222, 1e-05
    %v2225 = vadd.f32 %v2223, 1e-05
    %v2226 = vrsqrt.pop %v2224
    %v2227 = vrsqrt.pop %v2225
    %v2228 = vmul.f32 %v2204, %v2226
    %v2229 = vmul.f32 %v2205, %v2227
    %v2230 = vld [vmem:[%s16] sm:$0x3]
    %v2232 = vlaneseq
    %v2233 = vshrl.u32 %v2232, 7
    %v2234 = vsub.s32 0, %v2233
    %v2235 = vrot.slane %v2230, %v2234
    %v2236 = vlaneseq
    %v2237 = vshrl.u32 %v2236, 7
    %v2238 = vsub.s32 1, %v2237
    %v2239 = vrot.slane %v2230, %v2238
    %v2242 = vmul.f32 %v2228, %v2235
    %v2243 = vmul.f32 %v2229, %v2239
    %v2244 = vld [vmem:[%s17] sm:$0x3]
    %v2246 = vlaneseq
    %v2247 = vshrl.u32 %v2246, 7
    %v2248 = vsub.s32 0, %v2247
    %v2249 = vrot.slane %v2244, %v2248
    %v2250 = vlaneseq
    %v2251 = vshrl.u32 %v2250, 7
    %v2252 = vsub.s32 1, %v2251
    %v2253 = vrot.slane %v2244, %v2252
    %v2256 = vadd.f32 %v2242, %v2249
    %v2257 = vadd.f32 %v2243, %v2253
    %v2258 = vmax.f32 %v2256, 0.0
    %v2259 = vmax.f32 %v2257, 0.0
    %v2260 = vld [vmem:[#allocation20] sm:$0xff]
    %v2261 = vld [vmem:[#allocation20 + $0x8] sm:$0xff]
    %v2262 = vld [vmem:[#allocation20 + $0x10] sm:$0xff]
    %v2263 = vld [vmem:[#allocation20 + $0x18] sm:$0xff]
    %v2264 = vld [vmem:[#allocation20 + $0x20] sm:$0xff]
    %v2265 = vld [vmem:[#allocation20 + $0x28] sm:$0xff]
    %v2266 = vld [vmem:[#allocation20 + $0x30] sm:$0xff]
    %v2267 = vld [vmem:[#allocation20 + $0x38] sm:$0xff]
    %v2268 = vld [vmem:[#allocation20 + $0x40] sm:$0xff]
    %v2269 = vld [vmem:[#allocation20 + $0x48] sm:$0xff]
    %v2270 = vld [vmem:[#allocation20 + $0x50] sm:$0xff]
    %v2271 = vld [vmem:[#allocation20 + $0x58] sm:$0xff]
    %v2272 = vld [vmem:[#allocation20 + $0x60] sm:$0xff]
    %v2273 = vld [vmem:[#allocation20 + $0x68] sm:$0xff]
    %v2274 = vld [vmem:[#allocation20 + $0x70] sm:$0xff]
    %v2275 = vld [vmem:[#allocation20 + $0x78] sm:$0xff]
    %v2276 = vld [vmem:[#allocation20 + $0x80] sm:$0xff]
    %v2277 = vld [vmem:[#allocation20 + $0x88] sm:$0xff]
    %v2278 = vld [vmem:[#allocation20 + $0x90] sm:$0xff]
    %v2279 = vld [vmem:[#allocation20 + $0x98] sm:$0xff]
    %v2280 = vld [vmem:[#allocation20 + $0xa0] sm:$0xff]
    %v2281 = vld [vmem:[#allocation20 + $0xa8] sm:$0xff]
    %v2282 = vld [vmem:[#allocation20 + $0xb0] sm:$0xff]
    %v2283 = vld [vmem:[#allocation20 + $0xb8] sm:$0xff]
    %v2284 = vld [vmem:[#allocation20 + $0xc0] sm:$0xff]
    %v2285 = vld [vmem:[#allocation20 + $0xc8] sm:$0xff]
    %v2286 = vld [vmem:[#allocation20 + $0xd0] sm:$0xff]
    %v2287 = vld [vmem:[#allocation20 + $0xd8] sm:$0xff]
    %v2288 = vld [vmem:[#allocation20 + $0xe0] sm:$0xff]
    %v2289 = vld [vmem:[#allocation20 + $0xe8] sm:$0xff]
    %v2290 = vld [vmem:[#allocation20 + $0xf0] sm:$0xff]
    %v2291 = vld [vmem:[#allocation20 + $0xf8] sm:$0xff]
    %v2292 = vld [vmem:[%s19] sm:$0x1]
    %v2294 = vlaneseq
    %v2295 = vshrl.u32 %v2294, 7
    %v2296 = vsub.s32 0, %v2295
    %v2297 = vrot.slane %v2292, %v2296
    %2299 = vmatprep.subr.mxu0 0.0
    %2300 = vmatpush1.msra.mxu0 %v2275
    %2301 = vmatprep.subr.mxu0 0.0
    %2302 = vmatpush1.msra.mxu0 %v2274
    %2303 = vmatprep.subr.mxu0 0.0
    %2304 = vmatpush1.msra.mxu0 %v2273
    %2305 = vmatprep.subr.mxu0 0.0
    %2306 = vmatpush1.msra.mxu0 %v2272
    %2307 = vmatprep.subr.mxu0 0.0
    %2308 = vmatpush1.msra.mxu0 %v2271
    %2309 = vmatprep.subr.mxu0 0.0
    %2310 = vmatpush1.msra.mxu0 %v2270
    %2311 = vmatprep.subr.mxu0 0.0
    %2312 = vmatpush1.msra.mxu0 %v2269
    %2313 = vmatprep.subr.mxu0 0.0
    %2314 = vmatpush1.msra.mxu0 %v2268
    %2315 = vmatprep.subr.mxu0 0.0
    %2316 = vmatpush1.msra.mxu0 %v2267
    %2317 = vmatprep.subr.mxu0 0.0
    %2318 = vmatpush1.msra.mxu0 %v2266
    %2319 = vmatprep.subr.mxu0 0.0
    %2320 = vmatpush1.msra.mxu0 %v2265
    %2321 = vmatprep.subr.mxu0 0.0
    %2322 = vmatpush1.msra.mxu0 %v2264
    %2323 = vmatprep.subr.mxu0 0.0
    %2324 = vmatpush1.msra.mxu0 %v2263
    %2325 = vmatprep.subr.mxu0 0.0
    %2326 = vmatpush1.msra.mxu0 %v2262
    %2327 = vmatprep.subr.mxu0 0.0
    %2328 = vmatpush1.msra.mxu0 %v2261
    %2329 = vmatprep.subr.mxu0 0.0
    %2330 = vmatpush1.msra.mxu0 %v2260
    %2331 = vmatprep.subr.mxu0 0.0
    %2332 = vmatpush2.msra.mxu0 %v2291
    %2333 = vmatprep.subr.mxu0 0.0
    %2334 = vmatpush2.msra.mxu0 %v2290
    %2335 = vmatprep.subr.mxu0 0.0
    %2336 = vmatpush2.msra.mxu0 %v2289
    %2337 = vmatprep.subr.mxu0 0.0
    %2338 = vmatpush2.msra.mxu0 %v2288
    %2339 = vmatprep.subr.mxu0 0.0
    %2340 = vmatpush2.msra.mxu0 %v2287
    %2341 = vmatprep.subr.mxu0 0.0
    %2342 = vmatpush2.msra.mxu0 %v2286
    %2343 = vmatprep.subr.mxu0 0.0
    %2344 = vmatpush2.msra.mxu0 %v2285
    %2345 = vmatprep.subr.mxu0 0.0
    %2346 = vmatpush2.msra.mxu0 %v2284
    %2347 = vmatprep.subr.mxu0 0.0
    %2348 = vmatpush2.msra.mxu0 %v2283
    %2349 = vmatprep.subr.mxu0 0.0
    %2350 = vmatpush2.msra.mxu0 %v2282
    %2351 = vmatprep.subr.mxu0 0.0
    %2352 = vmatpush2.msra.mxu0 %v2281
    %2353 = vmatprep.subr.mxu0 0.0
    %2354 = vmatpush2.msra.mxu0 %v2280
    %2355 = vmatprep.subr.mxu0 0.0
    %2356 = vmatpush2.msra.mxu0 %v2279
    %2357 = vmatprep.subr.mxu0 0.0
    %2358 = vmatpush2.msra.mxu0 %v2278
    %2359 = vmatprep.subr.mxu0 0.0
    %2360 = vmatpush2.msra.mxu0 %v2277
    %2361 = vmatprep.subr.mxu0 0.0
    %2362 = vmatpush2.msra.mxu0 %v2276
    %2363 = vmatprep.mubr.f32.mxu0 %v2259
    %2364 = vmatmul.mubr.f32.gmra.mxu0 %v2258
    %v2365 = vpop.f32.mrf.mxu0
    %v2366 = vadd.f32 %v2297, %v2365
    %v2367 = vpop.f32.mrf.mxu0
    %2368 = vdwg.mxu0
    %v2369 = vxor.u32 %v2366, 2147483648
    %v2370 = vmul.f32 %v2369, 1.442695
    %v2371 = vpow.pop %v2370
    %v2372 = vadd.f32 %v2371, 1.0
    %v2373 = vrcp.pop %v2372
    %v2374 = vmul.f32 1.0, %v2373
    %2375 = vst [vmem:[#allocation22] sm:$0x3] %v2374
    // Predicated region
    $region130: #{tpu_custom_call.1} parent=1 // pred_check
      _
    $region131: #{tpu_custom_call.1} parent=1 // pred_check_branch
      %2377 = sbr.rel (0) target = $region133
    $region132: #{tpu_custom_call.1} parent=1 // pred_region
      %s2379 = ssub.s32 32, 32
      %2380 = vsyncadd [#allocation4], %s2379
      %s2382 = sshll.u32 [#allocation22], 4
      %s2383 = int_to_ptr.vmem [resolvable:$true] %s2382
      %2385 = dma.vmem_to_hbm [thread:$0]  %s2383, 32, %s20, [#allocation4]
    $region133: #{tpu_custom_call.1} parent=1 // pred_fallthru
      _
    // Predicated region
    $region134: #{tpu_custom_call.1} parent=1 // pred_check
      _
    $region135: #{tpu_custom_call.1} parent=1 // pred_check_branch
      %2387 = sbr.rel (0) target = $region137
    $region136: #{tpu_custom_call.1} parent=1 // pred_region
      %2388 = dma.done [#allocation4], 32
    $region137: #{tpu_custom_call.1} parent=1 // pred_fallthru
      _
    %2389 = vsyncpa [#allocation3], 1
    %2390 = vsyncpa [#allocation6], 1
    %2391 = vsyncpa [#allocation9], 1
    %2392 = vsyncpa [#allocation12], 1
    %2393 = vsyncpa [#allocation15], 1
    %2394 = vsyncpa [#allocation18], 1
    %2395 = vsyncpa [#allocation21], 1
    %2396 = vsyncpa [#allocation4], 1

</llo_original>
